<compile_context>
chip_gen: v6e
topology: v6e:2x2x1
jax: 0.10.0
libtpu: 0.0.40
codegen_flags: <defaults>
</compile_context>

<pallas_src>
import functools
import math

import jax
import jax.numpy as jnp
from jax.experimental import pallas as pl
from jax.experimental.pallas import tpu as pltpu


D_IN = 7
D_IN_PAD = 8        # 7 -> 8 padded input features
H1, H2, H3 = 512, 512, 128
D_OUT = 10
D_OUT_PAD = 128     # lane-dense output block (avoids masked vst)


def actor_kernel(x_ref, w1_ref, b1_ref, w2_ref, b2_ref,
                 w3_ref, b3_ref, w4_ref, b4_ref, o_ref, *, bf16_act):
    """Fused 4-layer MLP. bf16 MXU inputs, f32 accumulation.

    bf16_act=True  -> ReLU / inter-layer activations in bf16 (v6e/v7x VPU).
    bf16_act=False -> elementwise kept in f32 (v5e and older, no bf16 VPU).
    """
    def relu_to_bf16(h_f32):
        if bf16_act:
            return jnp.maximum(h_f32.astype(jnp.bfloat16),
                               jnp.bfloat16(0.0))
        return jnp.maximum(h_f32, 0.0).astype(jnp.bfloat16)

    # fc1 + ReLU  (f32 accumulate + bias add, then ReLU)
    h = jnp.dot(x_ref[...], w1_ref[...],
                preferred_element_type=jnp.float32) + b1_ref[...]
    h = relu_to_bf16(h)
    # fc2 + ReLU
    h = jnp.dot(h, w2_ref[...],
                preferred_element_type=jnp.float32) + b2_ref[...]
    h = relu_to_bf16(h)
    # fc3 + ReLU
    h = jnp.dot(h, w3_ref[...],
                preferred_element_type=jnp.float32) + b3_ref[...]
    h = relu_to_bf16(h)
    # fc4 + Tanh (columns >= 10 have zero weights/bias -> tanh(0)=0 padding)
    h = jnp.dot(h, w4_ref[...],
                preferred_element_type=jnp.float32) + b4_ref[...]
    o_ref[...] = jnp.tanh(h).astype(o_ref.dtype)


def _round_up(x, m):
    return (x + m - 1) // m * m


def _default_bf16_act():
    """bf16 elementwise only where the VPU supports it natively (v6e/v7x)."""
    try:
        kind = jax.devices()[0].device_kind.lower()
    except Exception:  # pragma: no cover - fall back to the modern default
        return True
    return not any(tag in kind for tag in ("v2", "v3", "v4", "v5"))


def _choose_tiling(B, tile_m):
    """Balanced batch tiling; >=2 even grid steps for v7x megacore at large B."""
    n_tiles = max(1, pl.cdiv(B, tile_m))
    if B >= 512:
        # Two TensorCores on v7x: make sure there are at least 2 (even number
        # of) parallel grid steps once splitting keeps tiles reasonably big.
        if n_tiles < 2:
            n_tiles = 2
        elif n_tiles % 2:
            n_tiles += 1
    TM = _round_up(pl.cdiv(B, n_tiles), 8)
    return TM, n_tiles


def actor_forward(x, params, *, tile_m=2048, bf16_act=None):
    """x: [B, 7] f32. Returns [B, 10] f32."""
    (w1, b1), (w2, b2), (w3, b3), (w4, b4) = params
    B, F = x.shape
    assert F == D_IN

    if bf16_act is None:
        bf16_act = _default_bf16_act()

    TM, n_tiles = _choose_tiling(B, tile_m)
    B_pad = TM * n_tiles

    # Pad features 7 -> 8, batch -> TM * n_tiles; cast activations to bf16.
    xp = jnp.zeros((B_pad, D_IN_PAD), jnp.bfloat16)
    xp = xp.at[:B, :F].set(x.astype(jnp.bfloat16))

    def const(shape):
        # Weights/biases: same block every grid step -> stay VMEM-resident.
        return pl.BlockSpec(shape, lambda i: (0, 0))

    flops = 2 * B_pad * (D_IN_PAD * H1 + H1 * H2 + H2 * H3 + H3 * D_OUT_PAD)
    bytes_accessed = (
        xp.size * 2
        + sum(w.size * 2 + b.size * 4 for (w, b) in params)
        + B_pad * D_OUT_PAD * 2)
    cost = pl.CostEstimate(flops=flops,
                           transcendentals=B_pad * D_OUT_PAD,
                           bytes_accessed=bytes_accessed)

    kernel = functools.partial(actor_kernel, bf16_act=bf16_act)

    out = pl.pallas_call(
        kernel,
        out_shape=jax.ShapeDtypeStruct((B_pad, D_OUT_PAD), jnp.bfloat16),
        grid=(n_tiles,),
        in_specs=[
            pl.BlockSpec((TM, D_IN_PAD), lambda i: (i, 0)),   # x tile
            const((D_IN_PAD, H1)), const((1, H1)),            # fc1
            const((H1, H2)), const((1, H2)),                  # fc2
            const((H2, H3)), const((1, H3)),                  # fc3
            const((H3, D_OUT_PAD)), const((1, D_OUT_PAD)),    # fc4 (padded)
        ],
        out_specs=pl.BlockSpec((TM, D_OUT_PAD), lambda i: (i, 0)),
        compiler_params=pltpu.CompilerParams(
            dimension_semantics=("parallel",)),
        cost_estimate=cost,
    )(xp, w1, b1, w2, b2, w3, b3, w4, b4)

    return out[:B, :D_OUT].astype(jnp.float32)


def init_actor_params(key):
    """Returns (bf16 kernel params, f32 reference params), both in
    [in, out] layout with fc1 padded to 8 inputs and fc4 padded to 128 outputs.
    """
    k1, k2, k3, k4 = jax.random.split(key, 4)

    def kaiming_t(k, out_f, in_f):
        # torch kaiming_uniform_ defaults (a=0, fan_in, leaky_relu gain=sqrt(2))
        bound = math.sqrt(6.0 / in_f)
        return jax.random.uniform(k, (in_f, out_f), jnp.float32, -bound, bound)

    def xavier_t(k, out_f, in_f):
        bound = math.sqrt(6.0 / (in_f + out_f))
        return jax.random.uniform(k, (in_f, out_f), jnp.float32, -bound, bound)

    w1 = kaiming_t(k1, H1, D_IN)      # [7, 512]
    w2 = kaiming_t(k2, H2, H1)        # [512, 512]
    w3 = kaiming_t(k3, H3, H2)        # [512, 128]
    w4 = xavier_t(k4, D_OUT, H3)      # [128, 10]

    # explicit zero-padding: fc1 inputs 7 -> 8, fc4 outputs 10 -> 128
    w1p = jnp.zeros((D_IN_PAD, H1), jnp.float32).at[:D_IN, :].set(w1)
    w4p = jnp.zeros((H3, D_OUT_PAD), jnp.float32).at[:, :D_OUT].set(w4)

    b1 = jnp.zeros((1, H1), jnp.float32)
    b2 = jnp.zeros((1, H2), jnp.float32)
    b3 = jnp.zeros((1, H3), jnp.float32)
    b4 = jnp.zeros((1, D_OUT_PAD), jnp.float32)

    params_f32 = ((w1p, b1), (w2, b2), (w3, b3), (w4p, b4))
    params_bf16 = tuple((w.astype(jnp.bfloat16), b) for (w, b) in params_f32)
    return params_bf16, params_f32


if __name__ == "__main__":
    key = jax.random.PRNGKey(0)
    pkey, xkey = jax.random.split(key)
    params, params_f32 = init_actor_params(pkey)

    B = 8
    x = jax.random.normal(xkey, (B, D_IN), dtype=jnp.float32)

    out = actor_forward(x, params)
    jax.block_until_ready(out)
    assert out.shape == (B, D_OUT)

    # sanity check against plain-JAX f32 reference (bf16 matmuls -> loose tol)
    (w1f, b1f), (w2f, b2f), (w3f, b3f), (w4f, b4f) = params_f32
    xp = jnp.zeros((B, D_IN_PAD), jnp.float32).at[:, :D_IN].set(x)
    h = jnp.maximum(xp @ w1f + b1f, 0.0)
    h = jnp.maximum(h @ w2f + b2f, 0.0)
    h = jnp.maximum(h @ w3f + b3f, 0.0)
    ref = jnp.tanh(h @ w4f + b4f)[:, :D_OUT]
    assert jnp.allclose(out, ref, atol=3e-2, rtol=3e-2), (
        float(jnp.max(jnp.abs(out - ref))))

    print("KERNEL_OK")
</pallas_src>

<mosaic_0001>
module attributes {stable_mosaic.version = 11 : i64} {
  func.func @actor_kernel(%arg0: i32, %arg1: memref<8x8xbf16, #tpu.memory_space<vmem>>, %arg2: memref<8x512xbf16, #tpu.memory_space<vmem>>, %arg3: memref<1x512xf32, #tpu.memory_space<vmem>>, %arg4: memref<512x512xbf16, #tpu.memory_space<vmem>>, %arg5: memref<1x512xf32, #tpu.memory_space<vmem>>, %arg6: memref<512x128xbf16, #tpu.memory_space<vmem>>, %arg7: memref<1x128xf32, #tpu.memory_space<vmem>>, %arg8: memref<128x128xbf16, #tpu.memory_space<vmem>>, %arg9: memref<1x128xf32, #tpu.memory_space<vmem>>, %arg10: memref<8x128xbf16, #tpu.memory_space<vmem>>) attributes {dimension_semantics = [#tpu.dimension_semantics<parallel>], iteration_bounds = array<i64: 1>, scalar_prefetch = 0 : i64, scratch_operands = 0 : i64, tpu.core_type = #tpu.core_type<tc>, window_params = [{transform_indices = @transform_0, window_bounds = array<i64: 8, 8>}, {pipeline_mode = #tpu.pipeline_mode<synchronous>, transform_indices = @transform_1, window_bounds = array<i64: 8, 512>}, {pipeline_mode = #tpu.pipeline_mode<synchronous>, transform_indices = @transform_2, window_bounds = array<i64: 1, 512>}, {pipeline_mode = #tpu.pipeline_mode<synchronous>, transform_indices = @transform_3, window_bounds = array<i64: 512, 512>}, {pipeline_mode = #tpu.pipeline_mode<synchronous>, transform_indices = @transform_4, window_bounds = array<i64: 1, 512>}, {pipeline_mode = #tpu.pipeline_mode<synchronous>, transform_indices = @transform_5, window_bounds = array<i64: 512, 128>}, {pipeline_mode = #tpu.pipeline_mode<synchronous>, transform_indices = @transform_6, window_bounds = array<i64: 1, 128>}, {pipeline_mode = #tpu.pipeline_mode<synchronous>, transform_indices = @transform_7, window_bounds = array<i64: 128, 128>}, {pipeline_mode = #tpu.pipeline_mode<synchronous>, transform_indices = @transform_8, window_bounds = array<i64: 1, 128>}, {transform_indices = @transform_9, window_bounds = array<i64: 8, 128>}]} {
    %c0 = arith.constant 0 : index
    %c0_0 = arith.constant 0 : index
    %0 = vector.load %arg1[%c0, %c0_0] : memref<8x8xbf16, #tpu.memory_space<vmem>>, vector<8x8xbf16>
    %c0_1 = arith.constant 0 : index
    %c0_2 = arith.constant 0 : index
    %1 = vector.load %arg2[%c0_1, %c0_2] : memref<8x512xbf16, #tpu.memory_space<vmem>>, vector<8x512xbf16>
    %cst = arith.constant dense<0.000000e+00> : vector<8x512xf32>
    %2 = tpu.matmul %0, %1, %cst {dimension_numbers = #tpu.dot_dimension_numbers<[1], [0], [0], [1], [0, 0, 1, 1], [], []>} : vector<8x8xbf16>, vector<8x512xbf16>, vector<8x512xf32> -> vector<8x512xf32>
    %c0_3 = arith.constant 0 : index
    %c0_4 = arith.constant 0 : index
    %3 = vector.load %arg3[%c0_3, %c0_4] : memref<1x512xf32, #tpu.memory_space<vmem>>, vector<1x512xf32>
    %4 = vector.broadcast %3 : vector<1x512xf32> to vector<8x512xf32>
    %5 = arith.addf %2, %4 : vector<8x512xf32>
    %6 = arith.truncf %5 : vector<8x512xf32> to vector<8x512xbf16>
    %cst_5 = arith.constant 0.000000e+00 : bf16
    %7 = vector.broadcast %cst_5 : bf16 to vector<8x512xbf16>
    %8 = arith.maximumf %6, %7 : vector<8x512xbf16>
    %c0_6 = arith.constant 0 : index
    %c0_7 = arith.constant 0 : index
    %9 = vector.load %arg4[%c0_6, %c0_7] : memref<512x512xbf16, #tpu.memory_space<vmem>>, vector<512x512xbf16>
    %cst_8 = arith.constant dense<0.000000e+00> : vector<8x512xf32>
    %10 = tpu.matmul %8, %9, %cst_8 {dimension_numbers = #tpu.dot_dimension_numbers<[1], [0], [0], [1], [0, 0, 1, 1], [], []>} : vector<8x512xbf16>, vector<512x512xbf16>, vector<8x512xf32> -> vector<8x512xf32>
    %c0_9 = arith.constant 0 : index
    %c0_10 = arith.constant 0 : index
    %11 = vector.load %arg5[%c0_9, %c0_10] : memref<1x512xf32, #tpu.memory_space<vmem>>, vector<1x512xf32>
    %12 = vector.broadcast %11 : vector<1x512xf32> to vector<8x512xf32>
    %13 = arith.addf %10, %12 : vector<8x512xf32>
    %14 = arith.truncf %13 : vector<8x512xf32> to vector<8x512xbf16>
    %cst_11 = arith.constant 0.000000e+00 : bf16
    %15 = vector.broadcast %cst_11 : bf16 to vector<8x512xbf16>
    %16 = arith.maximumf %14, %15 : vector<8x512xbf16>
    %c0_12 = arith.constant 0 : index
    %c0_13 = arith.constant 0 : index
    %17 = vector.load %arg6[%c0_12, %c0_13] : memref<512x128xbf16, #tpu.memory_space<vmem>>, vector<512x128xbf16>
    %cst_14 = arith.constant dense<0.000000e+00> : vector<8x128xf32>
    %18 = tpu.matmul %16, %17, %cst_14 {dimension_numbers = #tpu.dot_dimension_numbers<[1], [0], [0], [1], [0, 0, 1, 1], [], []>} : vector<8x512xbf16>, vector<512x128xbf16>, vector<8x128xf32> -> vector<8x128xf32>
    %c0_15 = arith.constant 0 : index
    %c0_16 = arith.constant 0 : index
    %19 = vector.load %arg7[%c0_15, %c0_16] : memref<1x128xf32, #tpu.memory_space<vmem>>, vector<1x128xf32>
    %20 = vector.broadcast %19 : vector<1x128xf32> to vector<8x128xf32>
    %21 = arith.addf %18, %20 : vector<8x128xf32>
    %22 = arith.truncf %21 : vector<8x128xf32> to vector<8x128xbf16>
    %cst_17 = arith.constant 0.000000e+00 : bf16
    %23 = vector.broadcast %cst_17 : bf16 to vector<8x128xbf16>
    %24 = arith.maximumf %22, %23 : vector<8x128xbf16>
    %c0_18 = arith.constant 0 : index
    %c0_19 = arith.constant 0 : index
    %25 = vector.load %arg8[%c0_18, %c0_19] : memref<128x128xbf16, #tpu.memory_space<vmem>>, vector<128x128xbf16>
    %cst_20 = arith.constant dense<0.000000e+00> : vector<8x128xf32>
    %26 = tpu.matmul %24, %25, %cst_20 {dimension_numbers = #tpu.dot_dimension_numbers<[1], [0], [0], [1], [0, 0, 1, 1], [], []>} : vector<8x128xbf16>, vector<128x128xbf16>, vector<8x128xf32> -> vector<8x128xf32>
    %c0_21 = arith.constant 0 : index
    %c0_22 = arith.constant 0 : index
    %27 = vector.load %arg9[%c0_21, %c0_22] : memref<1x128xf32, #tpu.memory_space<vmem>>, vector<1x128xf32>
    %28 = vector.broadcast %27 : vector<1x128xf32> to vector<8x128xf32>
    %29 = arith.addf %26, %28 : vector<8x128xf32>
    %30 = math.tanh %29 : vector<8x128xf32>
    %31 = arith.truncf %30 : vector<8x128xf32> to vector<8x128xbf16>
    %c0_23 = arith.constant 0 : index
    %c0_24 = arith.constant 0 : index
    %32 = vector.load %arg10[%c0_23, %c0_24] : memref<8x128xbf16, #tpu.memory_space<vmem>>, vector<8x128xbf16>
    tpu.vector_store %arg10[%c0_23, %c0_24], %31 {strides = array<i32>} : memref<8x128xbf16, #tpu.memory_space<vmem>>, vector<8x128xbf16>,
    return
  }
  func.func @transform_0(%arg0: i32) -> (i32, i32) {
    %c0_i32 = arith.constant 0 : i32
    %c0_i32_0 = arith.constant 0 : i32
    return %arg0, %c0_i32 : i32, i32
  }
  func.func @transform_1(%arg0: i32) -> (i32, i32) {
    %c0_i32 = arith.constant 0 : i32
    %c0_i32_0 = arith.constant 0 : i32
    %c0_i32_1 = arith.constant 0 : i32
    return %c0_i32, %c0_i32_0 : i32, i32
  }
  func.func @transform_2(%arg0: i32) -> (i32, i32) {
    %c0_i32 = arith.constant 0 : i32
    %c0_i32_0 = arith.constant 0 : i32
    %c0_i32_1 = arith.constant 0 : i32
    return %c0_i32, %c0_i32_0 : i32, i32
  }
  func.func @transform_3(%arg0: i32) -> (i32, i32) {
    %c0_i32 = arith.constant 0 : i32
    %c0_i32_0 = arith.constant 0 : i32
    %c0_i32_1 = arith.constant 0 : i32
    return %c0_i32, %c0_i32_0 : i32, i32
  }
  func.func @transform_4(%arg0: i32) -> (i32, i32) {
    %c0_i32 = arith.constant 0 : i32
    %c0_i32_0 = arith.constant 0 : i32
    %c0_i32_1 = arith.constant 0 : i32
    return %c0_i32, %c0_i32_0 : i32, i32
  }
  func.func @transform_5(%arg0: i32) -> (i32, i32) {
    %c0_i32 = arith.constant 0 : i32
    %c0_i32_0 = arith.constant 0 : i32
    %c0_i32_1 = arith.constant 0 : i32
    return %c0_i32, %c0_i32_0 : i32, i32
  }
  func.func @transform_6(%arg0: i32) -> (i32, i32) {
    %c0_i32 = arith.constant 0 : i32
    %c0_i32_0 = arith.constant 0 : i32
    %c0_i32_1 = arith.constant 0 : i32
    return %c0_i32, %c0_i32_0 : i32, i32
  }
  func.func @transform_7(%arg0: i32) -> (i32, i32) {
    %c0_i32 = arith.constant 0 : i32
    %c0_i32_0 = arith.constant 0 : i32
    %c0_i32_1 = arith.constant 0 : i32
    return %c0_i32, %c0_i32_0 : i32, i32
  }
  func.func @transform_8(%arg0: i32) -> (i32, i32) {
    %c0_i32 = arith.constant 0 : i32
    %c0_i32_0 = arith.constant 0 : i32
    %c0_i32_1 = arith.constant 0 : i32
    return %c0_i32, %c0_i32_0 : i32, i32
  }
  func.func @transform_9(%arg0: i32) -> (i32, i32) {
    %c0_i32 = arith.constant 0 : i32
    %c0_i32_0 = arith.constant 0 : i32
    return %arg0, %c0_i32 : i32, i32
  }
}

</mosaic_0001>

<llo_original>
// kernel: tpu_custom_call.1
$region0: #{tpu_custom_call.1}
  #allocation0 [shape = 'u32[]', space=smem, size = 0x4, offset = 0x4, fixed_abs, tag = 'smem constant byte address 0x4 - core index']
  #allocation1 [shape = 'u32[144,128]{1,0:T(1,128)}', space=vmem, size = 0x12000, scoped, tag = 'internal scratch']
  %s0 = inlined_call_operand.hbm [shape: bf16[8,8], index: 0, kind: input, shape index: {}]
  %s1 = inlined_call_operand.hbm [shape: bf16[8,512], index: 1, kind: input, shape index: {}]
  %s2 = inlined_call_operand.hbm [shape: f32[1,512], index: 2, kind: input, shape index: {}]
  %s3 = inlined_call_operand.hbm [shape: bf16[512,512], index: 3, kind: input, shape index: {}]
  %s4 = inlined_call_operand.vmem [shape: f32[1,512], index: 4, kind: input, shape index: {}]
  %s5 = inlined_call_operand.hbm [shape: bf16[512,128], index: 5, kind: input, shape index: {}]
  %s6 = inlined_call_operand.vmem [shape: f32[1,128], index: 6, kind: input, shape index: {}]
  %s7 = inlined_call_operand.hbm [shape: bf16[128,128], index: 7, kind: input, shape index: {}]
  %s8 = inlined_call_operand.vmem [shape: f32[1,128], index: 8, kind: input, shape index: {}]
  %s9 = inlined_call_operand.hbm [shape: bf16[8,128], index: 9, kind: output, shape index: {}]
  %s10 = sld [smem:[#allocation0]]
  $region70: #{tpu_custom_call.1} parent=0
    _
  %s12 = ssub.s32 1, %s10
  %s13 = scalar_select 0, %s12, %s10
  $region1: #{tpu_custom_call.1} parent=0
    #allocation2 [shape = 'u8[2048]{0}', space=vmem, size = 0x800, scoped, tag = 'input window, operand 0, single buffered']
    #allocation3 [shape = 's32[1]{0}', space=sflag, size = 0x4, scoped, tag = 'scoped memory for tpu_custom_call.1']
    #allocation4 [shape = 's32[1]{0}', space=sflag, size = 0x4, scoped, tag = 'scoped memory for tpu_custom_call.1']
    #allocation5 [shape = 'u8[8192]{0}', space=vmem, size = 0x2000, scoped, tag = 'input window, operand 1, single buffered']
    #allocation6 [shape = 's32[1]{0}', space=sflag, size = 0x4, scoped, tag = 'scoped memory for tpu_custom_call.1']
    #allocation7 [shape = 'u8[2048]{0}', space=vmem, size = 0x800, scoped, tag = 'input window, operand 2, single buffered']
    #allocation8 [shape = 'u8[524288]{0}', space=vmem, size = 0x80000, scoped, tag = 'input window, operand 3, single buffered']
    #allocation9 [shape = 's32[1]{0}', space=sflag, size = 0x4, scoped, tag = 'scoped memory for tpu_custom_call.1']
    #allocation10 [shape = 'u8[131072]{0}', space=vmem, size = 0x20000, scoped, tag = 'input window, operand 5, single buffered']
    #allocation11 [shape = 'u8[32768]{0}', space=vmem, size = 0x8000, scoped, tag = 'input window, operand 7, single buffered']
    #allocation12 [shape = 's32[1]{0}', space=sflag, size = 0x4, scoped, tag = 'scoped memory for tpu_custom_call.1']
    #allocation13 [shape = 'u8[2048]{0}', space=vmem, size = 0x800, scoped, tag = 'output window, operand 0, single buffered']
    %14 = vsyncpa [#allocation3], 0
    %15 = vsyncpa [#allocation6], 0
    %16 = vsyncpa [#allocation9], 0
    %17 = vsyncpa [#allocation12], 0
    %18 = vsyncpa [#allocation4], 0
    // Predicated region
    $region2: #{tpu_custom_call.1} parent=1 // pred_check
      _
    $region3: #{tpu_custom_call.1} parent=1 // pred_check_branch
      %20 = sbr.rel (0) target = $region5
    $region4: #{tpu_custom_call.1} parent=1 // pred_region
      %s22 = ssub.s32 64, 64
      %23 = vsyncadd [#allocation3], %s22
      %s25 = sshll.u32 [#allocation2], 4
      %s26 = int_to_ptr.vmem [resolvable:$true] %s25
      %28 = dma.hbm_to_vmem [thread:$0]  %s0, 64, %s26, [#allocation3]
    $region5: #{tpu_custom_call.1} parent=1 // pred_fallthru
      _
    // Predicated region
    $region6: #{tpu_custom_call.1} parent=1 // pred_check
      _
    $region7: #{tpu_custom_call.1} parent=1 // pred_check_branch
      %30 = sbr.rel (0) target = $region9
    $region8: #{tpu_custom_call.1} parent=1 // pred_region
      %s32 = ssub.s32 256, 256
      %33 = vsyncadd [#allocation6], %s32
      %s35 = sshll.u32 [#allocation5], 4
      %s36 = int_to_ptr.vmem [resolvable:$true] %s35
      %38 = dma.hbm_to_vmem [thread:$0]  %s1, 256, %s36, [#allocation6]
    $region9: #{tpu_custom_call.1} parent=1 // pred_fallthru
      _
    // Predicated region
    $region10: #{tpu_custom_call.1} parent=1 // pred_check
      _
    $region11: #{tpu_custom_call.1} parent=1 // pred_check_branch
      %40 = sbr.rel (0) target = $region13
    $region12: #{tpu_custom_call.1} parent=1 // pred_region
      %s42 = ssub.s32 64, 64
      %43 = vsyncadd [#allocation6], %s42
      %s45 = sshll.u32 [#allocation7], 4
      %s46 = int_to_ptr.vmem [resolvable:$true] %s45
      %48 = dma.hbm_to_vmem [thread:$0]  %s2, 64, %s46, [#allocation6]
    $region13: #{tpu_custom_call.1} parent=1 // pred_fallthru
      _
    // Predicated region
    $region14: #{tpu_custom_call.1} parent=1 // pred_check
      _
    $region15: #{tpu_custom_call.1} parent=1 // pred_check_branch
      %50 = sbr.rel (0) target = $region17
    $region16: #{tpu_custom_call.1} parent=1 // pred_region
      %s52 = ssub.s32 16384, 16384
      %53 = vsyncadd [#allocation9], %s52
      %s54 = sshll.u32 [#allocation8], 4
      %s55 = int_to_ptr.vmem [resolvable:$true] %s54
      %60 = dma.hbm_to_vmem [thread:$0]  %s3, 16384, %s55, [#allocation9], 256, 256, 16
    $region17: #{tpu_custom_call.1} parent=1 // pred_fallthru
      _
    // Predicated region
    $region18: #{tpu_custom_call.1} parent=1 // pred_check
      _
    $region19: #{tpu_custom_call.1} parent=1 // pred_check_branch
      %62 = sbr.rel (0) target = $region21
    $region20: #{tpu_custom_call.1} parent=1 // pred_region
      _
    $region21: #{tpu_custom_call.1} parent=1 // pred_fallthru
      _
    // Predicated region
    $region22: #{tpu_custom_call.1} parent=1 // pred_check
      _
    $region23: #{tpu_custom_call.1} parent=1 // pred_check_branch
      %64 = sbr.rel (0) target = $region25
    $region24: #{tpu_custom_call.1} parent=1 // pred_region
      %s66 = ssub.s32 4096, 4096
      %67 = vsyncadd [#allocation9], %s66
      %s68 = sshll.u32 [#allocation10], 4
      %s69 = int_to_ptr.vmem [resolvable:$true] %s68
      %74 = dma.hbm_to_vmem [thread:$0]  %s5, 4096, %s69, [#allocation9], 64, 64, 4
    $region25: #{tpu_custom_call.1} parent=1 // pred_fallthru
      _
    // Predicated region
    $region26: #{tpu_custom_call.1} parent=1 // pred_check
      _
    $region27: #{tpu_custom_call.1} parent=1 // pred_check_branch
      %76 = sbr.rel (0) target = $region29
    $region28: #{tpu_custom_call.1} parent=1 // pred_region
      _
    $region29: #{tpu_custom_call.1} parent=1 // pred_fallthru
      _
    // Predicated region
    $region30: #{tpu_custom_call.1} parent=1 // pred_check
      _
    $region31: #{tpu_custom_call.1} parent=1 // pred_check_branch
      %78 = sbr.rel (0) target = $region33
    $region32: #{tpu_custom_call.1} parent=1 // pred_region
      %s80 = ssub.s32 1024, 1024
      %81 = vsyncadd [#allocation12], %s80
      %s82 = sshll.u32 [#allocation11], 4
      %s83 = int_to_ptr.vmem [resolvable:$true] %s82
      %88 = dma.hbm_to_vmem [thread:$0]  %s7, 1024, %s83, [#allocation12], 64, 64, 4
    $region33: #{tpu_custom_call.1} parent=1 // pred_fallthru
      _
    // Predicated region
    $region34: #{tpu_custom_call.1} parent=1 // pred_check
      _
    $region35: #{tpu_custom_call.1} parent=1 // pred_check_branch
      %90 = sbr.rel (0) target = $region37
    $region36: #{tpu_custom_call.1} parent=1 // pred_region
      _
    $region37: #{tpu_custom_call.1} parent=1 // pred_fallthru
      _
    // Predicated region
    $region38: #{tpu_custom_call.1} parent=1 // pred_check
      _
    $region39: #{tpu_custom_call.1} parent=1 // pred_check_branch
      %92 = sbr.rel (0) target = $region41
    $region40: #{tpu_custom_call.1} parent=1 // pred_region
      %93 = dma.done [#allocation3], 64
    $region41: #{tpu_custom_call.1} parent=1 // pred_fallthru
      _
    // Predicated region
    $region42: #{tpu_custom_call.1} parent=1 // pred_check
      _
    $region43: #{tpu_custom_call.1} parent=1 // pred_check_branch
      %95 = sbr.rel (0) target = $region45
    $region44: #{tpu_custom_call.1} parent=1 // pred_region
      %96 = dma.done [#allocation6], 256
    $region45: #{tpu_custom_call.1} parent=1 // pred_fallthru
      _
    // Predicated region
    $region46: #{tpu_custom_call.1} parent=1 // pred_check
      _
    $region47: #{tpu_custom_call.1} parent=1 // pred_check_branch
      %98 = sbr.rel (0) target = $region49
    $region48: #{tpu_custom_call.1} parent=1 // pred_region
      %99 = dma.done [#allocation6], 64
    $region49: #{tpu_custom_call.1} parent=1 // pred_fallthru
      _
    // Predicated region
    $region50: #{tpu_custom_call.1} parent=1 // pred_check
      _
    $region51: #{tpu_custom_call.1} parent=1 // pred_check_branch
      %101 = sbr.rel (0) target = $region53
    $region52: #{tpu_custom_call.1} parent=1 // pred_region
      %102 = dma.done [#allocation9], 16384
    $region53: #{tpu_custom_call.1} parent=1 // pred_fallthru
      _
    // Predicated region
    $region54: #{tpu_custom_call.1} parent=1 // pred_check
      _
    $region55: #{tpu_custom_call.1} parent=1 // pred_check_branch
      %104 = sbr.rel (0) target = $region57
    $region56: #{tpu_custom_call.1} parent=1 // pred_region
      %105 = dma.done [#allocation9], 4096
    $region57: #{tpu_custom_call.1} parent=1 // pred_fallthru
      _
    // Predicated region
    $region58: #{tpu_custom_call.1} parent=1 // pred_check
      _
    $region59: #{tpu_custom_call.1} parent=1 // pred_check_branch
      %107 = sbr.rel (0) target = $region61
    $region60: #{tpu_custom_call.1} parent=1 // pred_region
      %108 = dma.done [#allocation12], 1024
    $region61: #{tpu_custom_call.1} parent=1 // pred_fallthru
      _
    %v110 = vld [vmem:[#allocation2] sm:$0xf]
    %v111 = vld [vmem:[#allocation5] sm:$0xff]
    %v112 = vld [vmem:[#allocation5 + $0x8] sm:$0xff]
    %v113 = vld [vmem:[#allocation7] sm:$0xf]
    %v115 = vlaneseq
    %v116 = vshrl.u32 %v115, 7
    %v117 = vsub.s32 0, %v116
    %v118 = vrot.slane %v113, %v117
    %v119 = vlaneseq
    %v120 = vshrl.u32 %v119, 7
    %v121 = vsub.s32 1, %v120
    %v122 = vrot.slane %v113, %v121
    %v123 = vlaneseq
    %v124 = vshrl.u32 %v123, 7
    %v125 = vsub.s32 2, %v124
    %v126 = vrot.slane %v113, %v125
    %v127 = vlaneseq
    %v128 = vshrl.u32 %v127, 7
    %v129 = vsub.s32 3, %v128
    %v130 = vrot.slane %v113, %v129
    %v137 = vunpack.c.l.b16 %v111
    %v138 = vunpack.c.h.b16 %v111
    %v139 = vunpack.c.l.b16 %v112
    %v140 = vunpack.c.h.b16 %v112
    %v141 = vpack.c.b16 %v137, %v137
    %v142 = vpack.c.b16 %v138, %v138
    %v143 = vpack.c.b16 %v139, %v139
    %v144 = vpack.c.b16 %v140, %v140
    %vm145 = vcmask 64512
    %v147 = vsel %vm145, %v110, 0
    %vm149 = vcmask 1043456
    %v151 = vsel %vm149, %v141, 0
    %v154 = vsel %vm149, %v142, 0
    %v157 = vsel %vm149, %v143, 0
    %v160 = vsel %vm149, %v144, 0
    %162 = vmatprep.subr.bf16.mxu0 0
    %163 = vmatpush1.bf16.msra.mxu0 0
    %164 = vmatprep.subr.bf16.mxu0 0
    %165 = vmatpush1.bf16.msra.mxu0 0
    %166 = vmatprep.subr.bf16.mxu0 0
    %167 = vmatpush1.bf16.msra.mxu0 0
    %168 = vmatprep.subr.bf16.mxu0 0
    %169 = vmatpush1.bf16.msra.mxu0 0
    %170 = vmatprep.subr.bf16.mxu0 0
    %171 = vmatpush1.bf16.msra.mxu0 0
    %172 = vmatprep.subr.bf16.mxu0 0
    %173 = vmatpush1.bf16.msra.mxu0 0
    %174 = vmatprep.subr.bf16.mxu0 0
    %175 = vmatpush1.bf16.msra.mxu0 0
    %176 = vmatprep.subr.bf16.mxu0 %v154
    %177 = vmatpush1.bf16.msra.mxu0 %v151
    %178 = vmatprep.subr.bf16.mxu0 0
    %179 = vmatpush2.bf16.msra.mxu0 0
    %180 = vmatprep.subr.bf16.mxu0 0
    %181 = vmatpush2.bf16.msra.mxu0 0
    %182 = vmatprep.subr.bf16.mxu0 0
    %183 = vmatpush2.bf16.msra.mxu0 0
    %184 = vmatprep.subr.bf16.mxu0 0
    %185 = vmatpush2.bf16.msra.mxu0 0
    %186 = vmatprep.subr.bf16.mxu0 0
    %187 = vmatpush2.bf16.msra.mxu0 0
    %188 = vmatprep.subr.bf16.mxu0 0
    %189 = vmatpush2.bf16.msra.mxu0 0
    %190 = vmatprep.subr.bf16.mxu0 0
    %191 = vmatpush2.bf16.msra.mxu0 0
    %192 = vmatprep.subr.bf16.mxu0 0
    %193 = vmatpush2.bf16.msra.mxu0 0
    %194 = vmatprep.mubr.bf16.mxu0 0
    %195 = vmatmul.mubr.bf16.gmra.mxu0 %v147
    %v196 = vpop.f32.mrf.mxu0
    %v197 = vadd.f32 %v118, %v196
    %v198 = vpop.f32.mrf.mxu0
    %v199 = vadd.f32 %v122, %v198
    %v200 = vpop.f32.mrf.mxu0
    %v201 = vpop.f32.mrf.mxu0
    %202 = vdwg.mxu0
    %203 = vmatprep.subr.bf16.mxu0 0
    %204 = vmatpush1.bf16.msra.mxu0 0
    %205 = vmatprep.subr.bf16.mxu0 0
    %206 = vmatpush1.bf16.msra.mxu0 0
    %207 = vmatprep.subr.bf16.mxu0 0
    %208 = vmatpush1.bf16.msra.mxu0 0
    %209 = vmatprep.subr.bf16.mxu0 0
    %210 = vmatpush1.bf16.msra.mxu0 0
    %211 = vmatprep.subr.bf16.mxu0 0
    %212 = vmatpush1.bf16.msra.mxu0 0
    %213 = vmatprep.subr.bf16.mxu0 0
    %214 = vmatpush1.bf16.msra.mxu0 0
    %215 = vmatprep.subr.bf16.mxu0 0
    %216 = vmatpush1.bf16.msra.mxu0 0
    %217 = vmatprep.subr.bf16.mxu0 %v160
    %218 = vmatpush1.bf16.msra.mxu0 %v157
    %219 = vmatprep.subr.bf16.mxu0 0
    %220 = vmatpush2.bf16.msra.mxu0 0
    %221 = vmatprep.subr.bf16.mxu0 0
    %222 = vmatpush2.bf16.msra.mxu0 0
    %223 = vmatprep.subr.bf16.mxu0 0
    %224 = vmatpush2.bf16.msra.mxu0 0
    %225 = vmatprep.subr.bf16.mxu0 0
    %226 = vmatpush2.bf16.msra.mxu0 0
    %227 = vmatprep.subr.bf16.mxu0 0
    %228 = vmatpush2.bf16.msra.mxu0 0
    %229 = vmatprep.subr.bf16.mxu0 0
    %230 = vmatpush2.bf16.msra.mxu0 0
    %231 = vmatprep.subr.bf16.mxu0 0
    %232 = vmatpush2.bf16.msra.mxu0 0
    %233 = vmatprep.subr.bf16.mxu0 0
    %234 = vmatpush2.bf16.msra.mxu0 0
    %235 = vmatprep.mubr.bf16.mxu0 0
    %236 = vmatmul.mubr.bf16.gmra.mxu0 %v147
    %v237 = vpop.f32.mrf.mxu0
    %v238 = vadd.f32 %v126, %v237
    %v239 = vpop.f32.mrf.mxu0
    %v240 = vadd.f32 %v130, %v239
    %v241 = vpop.f32.mrf.mxu0
    %v242 = vpop.f32.mrf.mxu0
    %243 = vdwg.mxu0
    %v244 = vpack.c.bf16 %v197, %v197
    %v245 = vpack.c.bf16 %v199, %v199
    %v246 = vpack.c.bf16 %v238, %v238
    %v247 = vpack.c.bf16 %v240, %v240
    %v248 = vmax.bf16 %v244, 0
    %v249 = vmax.bf16 %v245, 0
    %v250 = vmax.bf16 %v246, 0
    %v251 = vmax.bf16 %v247, 0
    %v252 = vld [vmem:[#allocation8] sm:$0xff]
    %v253 = vld [vmem:[#allocation8 + $0x8] sm:$0xff]
    %v254 = vld [vmem:[#allocation8 + $0x10] sm:$0xff]
    %v255 = vld [vmem:[#allocation8 + $0x18] sm:$0xff]
    %v256 = vld [vmem:[#allocation8 + $0x20] sm:$0xff]
    %v257 = vld [vmem:[#allocation8 + $0x28] sm:$0xff]
    %v258 = vld [vmem:[#allocation8 + $0x30] sm:$0xff]
    %v259 = vld [vmem:[#allocation8 + $0x38] sm:$0xff]
    %v260 = vld [vmem:[#allocation8 + $0x40] sm:$0xff]
    %v261 = vld [vmem:[#allocation8 + $0x48] sm:$0xff]
    %v262 = vld [vmem:[#allocation8 + $0x50] sm:$0xff]
    %v263 = vld [vmem:[#allocation8 + $0x58] sm:$0xff]
    %v264 = vld [vmem:[#allocation8 + $0x60] sm:$0xff]
    %v265 = vld [vmem:[#allocation8 + $0x68] sm:$0xff]
    %v266 = vld [vmem:[#allocation8 + $0x70] sm:$0xff]
    %v267 = vld [vmem:[#allocation8 + $0x78] sm:$0xff]
    %v268 = vld [vmem:[#allocation8 + $0x80] sm:$0xff]
    %v269 = vld [vmem:[#allocation8 + $0x88] sm:$0xff]
    %v270 = vld [vmem:[#allocation8 + $0x90] sm:$0xff]
    %v271 = vld [vmem:[#allocation8 + $0x98] sm:$0xff]
    %v272 = vld [vmem:[#allocation8 + $0xa0] sm:$0xff]
    %v273 = vld [vmem:[#allocation8 + $0xa8] sm:$0xff]
    %v274 = vld [vmem:[#allocation8 + $0xb0] sm:$0xff]
    %v275 = vld [vmem:[#allocation8 + $0xb8] sm:$0xff]
    %v276 = vld [vmem:[#allocation8 + $0xc0] sm:$0xff]
    %v277 = vld [vmem:[#allocation8 + $0xc8] sm:$0xff]
    %v278 = vld [vmem:[#allocation8 + $0xd0] sm:$0xff]
    %v279 = vld [vmem:[#allocation8 + $0xd8] sm:$0xff]
    %v280 = vld [vmem:[#allocation8 + $0xe0] sm:$0xff]
    %v281 = vld [vmem:[#allocation8 + $0xe8] sm:$0xff]
    %v282 = vld [vmem:[#allocation8 + $0xf0] sm:$0xff]
    %v283 = vld [vmem:[#allocation8 + $0xf8] sm:$0xff]
    %v284 = vld [vmem:[#allocation8 + $0x100] sm:$0xff]
    %v285 = vld [vmem:[#allocation8 + $0x108] sm:$0xff]
    %v286 = vld [vmem:[#allocation8 + $0x110] sm:$0xff]
    %v287 = vld [vmem:[#allocation8 + $0x118] sm:$0xff]
    %v288 = vld [vmem:[#allocation8 + $0x120] sm:$0xff]
    %v289 = vld [vmem:[#allocation8 + $0x128] sm:$0xff]
    %v290 = vld [vmem:[#allocation8 + $0x130] sm:$0xff]
    %v291 = vld [vmem:[#allocation8 + $0x138] sm:$0xff]
    %v292 = vld [vmem:[#allocation8 + $0x140] sm:$0xff]
    %v293 = vld [vmem:[#allocation8 + $0x148] sm:$0xff]
    %v294 = vld [vmem:[#allocation8 + $0x150] sm:$0xff]
    %v295 = vld [vmem:[#allocation8 + $0x158] sm:$0xff]
    %v296 = vld [vmem:[#allocation8 + $0x160] sm:$0xff]
    %v297 = vld [vmem:[#allocation8 + $0x168] sm:$0xff]
    %v298 = vld [vmem:[#allocation8 + $0x170] sm:$0xff]
    %v299 = vld [vmem:[#allocation8 + $0x178] sm:$0xff]
    %v300 = vld [vmem:[#allocation8 + $0x180] sm:$0xff]
    %v301 = vld [vmem:[#allocation8 + $0x188] sm:$0xff]
    %v302 = vld [vmem:[#allocation8 + $0x190] sm:$0xff]
    %v303 = vld [vmem:[#allocation8 + $0x198] sm:$0xff]
    %v304 = vld [vmem:[#allocation8 + $0x1a0] sm:$0xff]
    %v305 = vld [vmem:[#allocation8 + $0x1a8] sm:$0xff]
    %v306 = vld [vmem:[#allocation8 + $0x1b0] sm:$0xff]
    %v307 = vld [vmem:[#allocation8 + $0x1b8] sm:$0xff]
    %v308 = vld [vmem:[#allocation8 + $0x1c0] sm:$0xff]
    %v309 = vld [vmem:[#allocation8 + $0x1c8] sm:$0xff]
    %v310 = vld [vmem:[#allocation8 + $0x1d0] sm:$0xff]
    %v311 = vld [vmem:[#allocation8 + $0x1d8] sm:$0xff]
    %v312 = vld [vmem:[#allocation8 + $0x1e0] sm:$0xff]
    %v313 = vld [vmem:[#allocation8 + $0x1e8] sm:$0xff]
    %v314 = vld [vmem:[#allocation8 + $0x1f0] sm:$0xff]
    %v315 = vld [vmem:[#allocation8 + $0x1f8] sm:$0xff]
    %v316 = vld [vmem:[#allocation8 + $0x200] sm:$0xff]
    %v317 = vld [vmem:[#allocation8 + $0x208] sm:$0xff]
    %v318 = vld [vmem:[#allocation8 + $0x210] sm:$0xff]
    %v319 = vld [vmem:[#allocation8 + $0x218] sm:$0xff]
    %v320 = vld [vmem:[#allocation8 + $0x220] sm:$0xff]
    %v321 = vld [vmem:[#allocation8 + $0x228] sm:$0xff]
    %v322 = vld [vmem:[#allocation8 + $0x230] sm:$0xff]
    %v323 = vld [vmem:[#allocation8 + $0x238] sm:$0xff]
    %v324 = vld [vmem:[#allocation8 + $0x240] sm:$0xff]
    %v325 = vld [vmem:[#allocation8 + $0x248] sm:$0xff]
    %v326 = vld [vmem:[#allocation8 + $0x250] sm:$0xff]
    %v327 = vld [vmem:[#allocation8 + $0x258] sm:$0xff]
    %v328 = vld [vmem:[#allocation8 + $0x260] sm:$0xff]
    %v329 = vld [vmem:[#allocation8 + $0x268] sm:$0xff]
    %v330 = vld [vmem:[#allocation8 + $0x270] sm:$0xff]
    %v331 = vld [vmem:[#allocation8 + $0x278] sm:$0xff]
    %v332 = vld [vmem:[#allocation8 + $0x280] sm:$0xff]
    %v333 = vld [vmem:[#allocation8 + $0x288] sm:$0xff]
    %v334 = vld [vmem:[#allocation8 + $0x290] sm:$0xff]
    %v335 = vld [vmem:[#allocation8 + $0x298] sm:$0xff]
    %v336 = vld [vmem:[#allocation8 + $0x2a0] sm:$0xff]
    %v337 = vld [vmem:[#allocation8 + $0x2a8] sm:$0xff]
    %v338 = vld [vmem:[#allocation8 + $0x2b0] sm:$0xff]
    %v339 = vld [vmem:[#allocation8 + $0x2b8] sm:$0xff]
    %v340 = vld [vmem:[#allocation8 + $0x2c0] sm:$0xff]
    %v341 = vld [vmem:[#allocation8 + $0x2c8] sm:$0xff]
    %v342 = vld [vmem:[#allocation8 + $0x2d0] sm:$0xff]
    %v343 = vld [vmem:[#allocation8 + $0x2d8] sm:$0xff]
    %v344 = vld [vmem:[#allocation8 + $0x2e0] sm:$0xff]
    %v345 = vld [vmem:[#allocation8 + $0x2e8] sm:$0xff]
    %v346 = vld [vmem:[#allocation8 + $0x2f0] sm:$0xff]
    %v347 = vld [vmem:[#allocation8 + $0x2f8] sm:$0xff]
    %v348 = vld [vmem:[#allocation8 + $0x300] sm:$0xff]
    %v349 = vld [vmem:[#allocation8 + $0x308] sm:$0xff]
    %v350 = vld [vmem:[#allocation8 + $0x310] sm:$0xff]
    %v351 = vld [vmem:[#allocation8 + $0x318] sm:$0xff]
    %v352 = vld [vmem:[#allocation8 + $0x320] sm:$0xff]
    %v353 = vld [vmem:[#allocation8 + $0x328] sm:$0xff]
    %v354 = vld [vmem:[#allocation8 + $0x330] sm:$0xff]
    %v355 = vld [vmem:[#allocation8 + $0x338] sm:$0xff]
    %v356 = vld [vmem:[#allocation8 + $0x340] sm:$0xff]
    %v357 = vld [vmem:[#allocation8 + $0x348] sm:$0xff]
    %v358 = vld [vmem:[#allocation8 + $0x350] sm:$0xff]
    %v359 = vld [vmem:[#allocation8 + $0x358] sm:$0xff]
    %v360 = vld [vmem:[#allocation8 + $0x360] sm:$0xff]
    %v361 = vld [vmem:[#allocation8 + $0x368] sm:$0xff]
    %v362 = vld [vmem:[#allocation8 + $0x370] sm:$0xff]
    %v363 = vld [vmem:[#allocation8 + $0x378] sm:$0xff]
    %v364 = vld [vmem:[#allocation8 + $0x380] sm:$0xff]
    %v365 = vld [vmem:[#allocation8 + $0x388] sm:$0xff]
    %v366 = vld [vmem:[#allocation8 + $0x390] sm:$0xff]
    %v367 = vld [vmem:[#allocation8 + $0x398] sm:$0xff]
    %v368 = vld [vmem:[#allocation8 + $0x3a0] sm:$0xff]
    %v369 = vld [vmem:[#allocation8 + $0x3a8] sm:$0xff]
    %v370 = vld [vmem:[#allocation8 + $0x3b0] sm:$0xff]
    %v371 = vld [vmem:[#allocation8 + $0x3b8] sm:$0xff]
    %v372 = vld [vmem:[#allocation8 + $0x3c0] sm:$0xff]
    %v373 = vld [vmem:[#allocation8 + $0x3c8] sm:$0xff]
    %v374 = vld [vmem:[#allocation8 + $0x3d0] sm:$0xff]
    %v375 = vld [vmem:[#allocation8 + $0x3d8] sm:$0xff]
    %v376 = vld [vmem:[#allocation8 + $0x3e0] sm:$0xff]
    %v377 = vld [vmem:[#allocation8 + $0x3e8] sm:$0xff]
    %v378 = vld [vmem:[#allocation8 + $0x3f0] sm:$0xff]
    %v379 = vld [vmem:[#allocation8 + $0x3f8] sm:$0xff]
    %v380 = vld [vmem:[%s4] sm:$0xf]
    %v382 = vlaneseq
    %v383 = vshrl.u32 %v382, 7
    %v384 = vsub.s32 0, %v383
    %v385 = vrot.slane %v380, %v384
    %v386 = vlaneseq
    %v387 = vshrl.u32 %v386, 7
    %v388 = vsub.s32 1, %v387
    %v389 = vrot.slane %v380, %v388
    %v390 = vlaneseq
    %v391 = vshrl.u32 %v390, 7
    %v392 = vsub.s32 2, %v391
    %v393 = vrot.slane %v380, %v392
    %v394 = vlaneseq
    %v395 = vshrl.u32 %v394, 7
    %v396 = vsub.s32 3, %v395
    %v397 = vrot.slane %v380, %v396
    %v530 = vunpack.c.l.b16 %v252
    %v531 = vunpack.c.h.b16 %v252
    %v532 = vunpack.c.l.b16 %v253
    %v533 = vunpack.c.h.b16 %v253
    %v534 = vunpack.c.l.b16 %v254
    %v535 = vunpack.c.h.b16 %v254
    %v536 = vunpack.c.l.b16 %v255
    %v537 = vunpack.c.h.b16 %v255
    %v538 = vunpack.c.l.b16 %v256
    %v539 = vunpack.c.h.b16 %v256
    %v540 = vunpack.c.l.b16 %v257
    %v541 = vunpack.c.h.b16 %v257
    %v542 = vunpack.c.l.b16 %v258
    %v543 = vunpack.c.h.b16 %v258
    %v544 = vunpack.c.l.b16 %v259
    %v545 = vunpack.c.h.b16 %v259
    %v546 = vunpack.c.l.b16 %v260
    %v547 = vunpack.c.h.b16 %v260
    %v548 = vunpack.c.l.b16 %v261
    %v549 = vunpack.c.h.b16 %v261
    %v550 = vunpack.c.l.b16 %v262
    %v551 = vunpack.c.h.b16 %v262
    %v552 = vunpack.c.l.b16 %v263
    %v553 = vunpack.c.h.b16 %v263
    %v554 = vunpack.c.l.b16 %v264
    %v555 = vunpack.c.h.b16 %v264
    %v556 = vunpack.c.l.b16 %v265
    %v557 = vunpack.c.h.b16 %v265
    %v558 = vunpack.c.l.b16 %v266
    %v559 = vunpack.c.h.b16 %v266
    %v560 = vunpack.c.l.b16 %v267
    %v561 = vunpack.c.h.b16 %v267
    %v562 = vunpack.c.l.b16 %v268
    %v563 = vunpack.c.h.b16 %v268
    %v564 = vunpack.c.l.b16 %v269
    %v565 = vunpack.c.h.b16 %v269
    %v566 = vunpack.c.l.b16 %v270
    %v567 = vunpack.c.h.b16 %v270
    %v568 = vunpack.c.l.b16 %v271
    %v569 = vunpack.c.h.b16 %v271
    %v570 = vunpack.c.l.b16 %v272
    %v571 = vunpack.c.h.b16 %v272
    %v572 = vunpack.c.l.b16 %v273
    %v573 = vunpack.c.h.b16 %v273
    %v574 = vunpack.c.l.b16 %v274
    %v575 = vunpack.c.h.b16 %v274
    %v576 = vunpack.c.l.b16 %v275
    %v577 = vunpack.c.h.b16 %v275
    %v578 = vunpack.c.l.b16 %v276
    %v579 = vunpack.c.h.b16 %v276
    %v580 = vunpack.c.l.b16 %v277
    %v581 = vunpack.c.h.b16 %v277
    %v582 = vunpack.c.l.b16 %v278
    %v583 = vunpack.c.h.b16 %v278
    %v584 = vunpack.c.l.b16 %v279
    %v585 = vunpack.c.h.b16 %v279
    %v586 = vunpack.c.l.b16 %v280
    %v587 = vunpack.c.h.b16 %v280
    %v588 = vunpack.c.l.b16 %v281
    %v589 = vunpack.c.h.b16 %v281
    %v590 = vunpack.c.l.b16 %v282
    %v591 = vunpack.c.h.b16 %v282
    %v592 = vunpack.c.l.b16 %v283
    %v593 = vunpack.c.h.b16 %v283
    %v594 = vunpack.c.l.b16 %v284
    %v595 = vunpack.c.h.b16 %v284
    %v596 = vunpack.c.l.b16 %v285
    %v597 = vunpack.c.h.b16 %v285
    %v598 = vunpack.c.l.b16 %v286
    %v599 = vunpack.c.h.b16 %v286
    %v600 = vunpack.c.l.b16 %v287
    %v601 = vunpack.c.h.b16 %v287
    %v602 = vunpack.c.l.b16 %v288
    %v603 = vunpack.c.h.b16 %v288
    %v604 = vunpack.c.l.b16 %v289
    %v605 = vunpack.c.h.b16 %v289
    %v606 = vunpack.c.l.b16 %v290
    %v607 = vunpack.c.h.b16 %v290
    %v608 = vunpack.c.l.b16 %v291
    %v609 = vunpack.c.h.b16 %v291
    %v610 = vunpack.c.l.b16 %v292
    %v611 = vunpack.c.h.b16 %v292
    %v612 = vunpack.c.l.b16 %v293
    %v613 = vunpack.c.h.b16 %v293
    %v614 = vunpack.c.l.b16 %v294
    %v615 = vunpack.c.h.b16 %v294
    %v616 = vunpack.c.l.b16 %v295
    %v617 = vunpack.c.h.b16 %v295
    %v618 = vunpack.c.l.b16 %v296
    %v619 = vunpack.c.h.b16 %v296
    %v620 = vunpack.c.l.b16 %v297
    %v621 = vunpack.c.h.b16 %v297
    %v622 = vunpack.c.l.b16 %v298
    %v623 = vunpack.c.h.b16 %v298
    %v624 = vunpack.c.l.b16 %v299
    %v625 = vunpack.c.h.b16 %v299
    %v626 = vunpack.c.l.b16 %v300
    %v627 = vunpack.c.h.b16 %v300
    %v628 = vunpack.c.l.b16 %v301
    %v629 = vunpack.c.h.b16 %v301
    %v630 = vunpack.c.l.b16 %v302
    %v631 = vunpack.c.h.b16 %v302
    %v632 = vunpack.c.l.b16 %v303
    %v633 = vunpack.c.h.b16 %v303
    %v634 = vunpack.c.l.b16 %v304
    %v635 = vunpack.c.h.b16 %v304
    %v636 = vunpack.c.l.b16 %v305
    %v637 = vunpack.c.h.b16 %v305
    %v638 = vunpack.c.l.b16 %v306
    %v639 = vunpack.c.h.b16 %v306
    %v640 = vunpack.c.l.b16 %v307
    %v641 = vunpack.c.h.b16 %v307
    %v642 = vunpack.c.l.b16 %v308
    %v643 = vunpack.c.h.b16 %v308
    %v644 = vunpack.c.l.b16 %v309
    %v645 = vunpack.c.h.b16 %v309
    %v646 = vunpack.c.l.b16 %v310
    %v647 = vunpack.c.h.b16 %v310
    %v648 = vunpack.c.l.b16 %v311
    %v649 = vunpack.c.h.b16 %v311
    %v650 = vunpack.c.l.b16 %v312
    %v651 = vunpack.c.h.b16 %v312
    %v652 = vunpack.c.l.b16 %v313
    %v653 = vunpack.c.h.b16 %v313
    %v654 = vunpack.c.l.b16 %v314
    %v655 = vunpack.c.h.b16 %v314
    %v656 = vunpack.c.l.b16 %v315
    %v657 = vunpack.c.h.b16 %v315
    %v658 = vunpack.c.l.b16 %v316
    %v659 = vunpack.c.h.b16 %v316
    %v660 = vunpack.c.l.b16 %v317
    %v661 = vunpack.c.h.b16 %v317
    %v662 = vunpack.c.l.b16 %v318
    %v663 = vunpack.c.h.b16 %v318
    %v664 = vunpack.c.l.b16 %v319
    %v665 = vunpack.c.h.b16 %v319
    %v666 = vunpack.c.l.b16 %v320
    %v667 = vunpack.c.h.b16 %v320
    %v668 = vunpack.c.l.b16 %v321
    %v669 = vunpack.c.h.b16 %v321
    %v670 = vunpack.c.l.b16 %v322
    %v671 = vunpack.c.h.b16 %v322
    %v672 = vunpack.c.l.b16 %v323
    %v673 = vunpack.c.h.b16 %v323
    %v674 = vunpack.c.l.b16 %v324
    %v675 = vunpack.c.h.b16 %v324
    %v676 = vunpack.c.l.b16 %v325
    %v677 = vunpack.c.h.b16 %v325
    %v678 = vunpack.c.l.b16 %v326
    %v679 = vunpack.c.h.b16 %v326
    %v680 = vunpack.c.l.b16 %v327
    %v681 = vunpack.c.h.b16 %v327
    %v682 = vunpack.c.l.b16 %v328
    %v683 = vunpack.c.h.b16 %v328
    %v684 = vunpack.c.l.b16 %v329
    %v685 = vunpack.c.h.b16 %v329
    %v686 = vunpack.c.l.b16 %v330
    %v687 = vunpack.c.h.b16 %v330
    %v688 = vunpack.c.l.b16 %v331
    %v689 = vunpack.c.h.b16 %v331
    %v690 = vunpack.c.l.b16 %v332
    %v691 = vunpack.c.h.b16 %v332
    %v692 = vunpack.c.l.b16 %v333
    %v693 = vunpack.c.h.b16 %v333
    %v694 = vunpack.c.l.b16 %v334
    %v695 = vunpack.c.h.b16 %v334
    %v696 = vunpack.c.l.b16 %v335
    %v697 = vunpack.c.h.b16 %v335
    %v698 = vunpack.c.l.b16 %v336
    %v699 = vunpack.c.h.b16 %v336
    %v700 = vunpack.c.l.b16 %v337
    %v701 = vunpack.c.h.b16 %v337
    %v702 = vunpack.c.l.b16 %v338
    %v703 = vunpack.c.h.b16 %v338
    %v704 = vunpack.c.l.b16 %v339
    %v705 = vunpack.c.h.b16 %v339
    %v706 = vunpack.c.l.b16 %v340
    %v707 = vunpack.c.h.b16 %v340
    %v708 = vunpack.c.l.b16 %v341
    %v709 = vunpack.c.h.b16 %v341
    %v710 = vunpack.c.l.b16 %v342
    %v711 = vunpack.c.h.b16 %v342
    %v712 = vunpack.c.l.b16 %v343
    %v713 = vunpack.c.h.b16 %v343
    %v714 = vunpack.c.l.b16 %v344
    %v715 = vunpack.c.h.b16 %v344
    %v716 = vunpack.c.l.b16 %v345
    %v717 = vunpack.c.h.b16 %v345
    %v718 = vunpack.c.l.b16 %v346
    %v719 = vunpack.c.h.b16 %v346
    %v720 = vunpack.c.l.b16 %v347
    %v721 = vunpack.c.h.b16 %v347
    %v722 = vunpack.c.l.b16 %v348
    %v723 = vunpack.c.h.b16 %v348
    %v724 = vunpack.c.l.b16 %v349
    %v725 = vunpack.c.h.b16 %v349
    %v726 = vunpack.c.l.b16 %v350
    %v727 = vunpack.c.h.b16 %v350
    %v728 = vunpack.c.l.b16 %v351
    %v729 = vunpack.c.h.b16 %v351
    %v730 = vunpack.c.l.b16 %v352
    %v731 = vunpack.c.h.b16 %v352
    %v732 = vunpack.c.l.b16 %v353
    %v733 = vunpack.c.h.b16 %v353
    %v734 = vunpack.c.l.b16 %v354
    %v735 = vunpack.c.h.b16 %v354
    %v736 = vunpack.c.l.b16 %v355
    %v737 = vunpack.c.h.b16 %v355
    %v738 = vunpack.c.l.b16 %v356
    %v739 = vunpack.c.h.b16 %v356
    %v740 = vunpack.c.l.b16 %v357
    %v741 = vunpack.c.h.b16 %v357
    %v742 = vunpack.c.l.b16 %v358
    %v743 = vunpack.c.h.b16 %v358
    %v744 = vunpack.c.l.b16 %v359
    %v745 = vunpack.c.h.b16 %v359
    %v746 = vunpack.c.l.b16 %v360
    %v747 = vunpack.c.h.b16 %v360
    %v748 = vunpack.c.l.b16 %v361
    %v749 = vunpack.c.h.b16 %v361
    %v750 = vunpack.c.l.b16 %v362
    %v751 = vunpack.c.h.b16 %v362
    %v752 = vunpack.c.l.b16 %v363
    %v753 = vunpack.c.h.b16 %v363
    %v754 = vunpack.c.l.b16 %v364
    %v755 = vunpack.c.h.b16 %v364
    %v756 = vunpack.c.l.b16 %v365
    %v757 = vunpack.c.h.b16 %v365
    %v758 = vunpack.c.l.b16 %v366
    %v759 = vunpack.c.h.b16 %v366
    %v760 = vunpack.c.l.b16 %v367
    %v761 = vunpack.c.h.b16 %v367
    %v762 = vunpack.c.l.b16 %v368
    %v763 = vunpack.c.h.b16 %v368
    %v764 = vunpack.c.l.b16 %v369
    %v765 = vunpack.c.h.b16 %v369
    %v766 = vunpack.c.l.b16 %v370
    %v767 = vunpack.c.h.b16 %v370
    %v768 = vunpack.c.l.b16 %v371
    %v769 = vunpack.c.h.b16 %v371
    %v770 = vunpack.c.l.b16 %v372
    %v771 = vunpack.c.h.b16 %v372
    %v772 = vunpack.c.l.b16 %v373
    %v773 = vunpack.c.h.b16 %v373
    %v774 = vunpack.c.l.b16 %v374
    %v775 = vunpack.c.h.b16 %v374
    %v776 = vunpack.c.l.b16 %v375
    %v777 = vunpack.c.h.b16 %v375
    %v778 = vunpack.c.l.b16 %v376
    %v779 = vunpack.c.h.b16 %v376
    %v780 = vunpack.c.l.b16 %v377
    %v781 = vunpack.c.h.b16 %v377
    %v782 = vunpack.c.l.b16 %v378
    %v783 = vunpack.c.h.b16 %v378
    %v784 = vunpack.c.l.b16 %v379
    %v785 = vunpack.c.h.b16 %v379
    %v786 = vpack.c.b16 %v534, %v530
    %v787 = vpack.c.b16 %v535, %v531
    %v788 = vpack.c.b16 %v536, %v532
    %v789 = vpack.c.b16 %v537, %v533
    %v790 = vpack.c.b16 %v542, %v538
    %v791 = vpack.c.b16 %v543, %v539
    %v792 = vpack.c.b16 %v544, %v540
    %v793 = vpack.c.b16 %v545, %v541
    %v794 = vpack.c.b16 %v550, %v546
    %v795 = vpack.c.b16 %v551, %v547
    %v796 = vpack.c.b16 %v552, %v548
    %v797 = vpack.c.b16 %v553, %v549
    %v798 = vpack.c.b16 %v558, %v554
    %v799 = vpack.c.b16 %v559, %v555
    %v800 = vpack.c.b16 %v560, %v556
    %v801 = vpack.c.b16 %v561, %v557
    %v802 = vpack.c.b16 %v566, %v562
    %v803 = vpack.c.b16 %v567, %v563
    %v804 = vpack.c.b16 %v568, %v564
    %v805 = vpack.c.b16 %v569, %v565
    %v806 = vpack.c.b16 %v574, %v570
    %v807 = vpack.c.b16 %v575, %v571
    %v808 = vpack.c.b16 %v576, %v572
    %v809 = vpack.c.b16 %v577, %v573
    %v810 = vpack.c.b16 %v582, %v578
    %v811 = vpack.c.b16 %v583, %v579
    %v812 = vpack.c.b16 %v584, %v580
    %v813 = vpack.c.b16 %v585, %v581
    %v814 = vpack.c.b16 %v590, %v586
    %v815 = vpack.c.b16 %v591, %v587
    %v816 = vpack.c.b16 %v592, %v588
    %v817 = vpack.c.b16 %v593, %v589
    %v818 = vpack.c.b16 %v598, %v594
    %v819 = vpack.c.b16 %v599, %v595
    %v820 = vpack.c.b16 %v600, %v596
    %v821 = vpack.c.b16 %v601, %v597
    %v822 = vpack.c.b16 %v606, %v602
    %v823 = vpack.c.b16 %v607, %v603
    %v824 = vpack.c.b16 %v608, %v604
    %v825 = vpack.c.b16 %v609, %v605
    %v826 = vpack.c.b16 %v614, %v610
    %v827 = vpack.c.b16 %v615, %v611
    %v828 = vpack.c.b16 %v616, %v612
    %v829 = vpack.c.b16 %v617, %v613
    %v830 = vpack.c.b16 %v622, %v618
    %v831 = vpack.c.b16 %v623, %v619
    %v832 = vpack.c.b16 %v624, %v620
    %v833 = vpack.c.b16 %v625, %v621
    %v834 = vpack.c.b16 %v630, %v626
    %v835 = vpack.c.b16 %v631, %v627
    %v836 = vpack.c.b16 %v632, %v628
    %v837 = vpack.c.b16 %v633, %v629
    %v838 = vpack.c.b16 %v638, %v634
    %v839 = vpack.c.b16 %v639, %v635
    %v840 = vpack.c.b16 %v640, %v636
    %v841 = vpack.c.b16 %v641, %v637
    %v842 = vpack.c.b16 %v646, %v642
    %v843 = vpack.c.b16 %v647, %v643
    %v844 = vpack.c.b16 %v648, %v644
    %v845 = vpack.c.b16 %v649, %v645
    %v846 = vpack.c.b16 %v654, %v650
    %v847 = vpack.c.b16 %v655, %v651
    %v848 = vpack.c.b16 %v656, %v652
    %v849 = vpack.c.b16 %v657, %v653
    %v850 = vpack.c.b16 %v662, %v658
    %v851 = vpack.c.b16 %v663, %v659
    %v852 = vpack.c.b16 %v664, %v660
    %v853 = vpack.c.b16 %v665, %v661
    %v854 = vpack.c.b16 %v670, %v666
    %v855 = vpack.c.b16 %v671, %v667
    %v856 = vpack.c.b16 %v672, %v668
    %v857 = vpack.c.b16 %v673, %v669
    %v858 = vpack.c.b16 %v678, %v674
    %v859 = vpack.c.b16 %v679, %v675
    %v860 = vpack.c.b16 %v680, %v676
    %v861 = vpack.c.b16 %v681, %v677
    %v862 = vpack.c.b16 %v686, %v682
    %v863 = vpack.c.b16 %v687, %v683
    %v864 = vpack.c.b16 %v688, %v684
    %v865 = vpack.c.b16 %v689, %v685
    %v866 = vpack.c.b16 %v694, %v690
    %v867 = vpack.c.b16 %v695, %v691
    %v868 = vpack.c.b16 %v696, %v692
    %v869 = vpack.c.b16 %v697, %v693
    %v870 = vpack.c.b16 %v702, %v698
    %v871 = vpack.c.b16 %v703, %v699
    %v872 = vpack.c.b16 %v704, %v700
    %v873 = vpack.c.b16 %v705, %v701
    %v874 = vpack.c.b16 %v710, %v706
    %v875 = vpack.c.b16 %v711, %v707
    %v876 = vpack.c.b16 %v712, %v708
    %v877 = vpack.c.b16 %v713, %v709
    %v878 = vpack.c.b16 %v718, %v714
    %v879 = vpack.c.b16 %v719, %v715
    %v880 = vpack.c.b16 %v720, %v716
    %v881 = vpack.c.b16 %v721, %v717
    %v882 = vpack.c.b16 %v726, %v722
    %v883 = vpack.c.b16 %v727, %v723
    %v884 = vpack.c.b16 %v728, %v724
    %v885 = vpack.c.b16 %v729, %v725
    %v886 = vpack.c.b16 %v734, %v730
    %v887 = vpack.c.b16 %v735, %v731
    %v888 = vpack.c.b16 %v736, %v732
    %v889 = vpack.c.b16 %v737, %v733
    %v890 = vpack.c.b16 %v742, %v738
    %v891 = vpack.c.b16 %v743, %v739
    %v892 = vpack.c.b16 %v744, %v740
    %v893 = vpack.c.b16 %v745, %v741
    %v894 = vpack.c.b16 %v750, %v746
    %v895 = vpack.c.b16 %v751, %v747
    %v896 = vpack.c.b16 %v752, %v748
    %v897 = vpack.c.b16 %v753, %v749
    %v898 = vpack.c.b16 %v758, %v754
    %v899 = vpack.c.b16 %v759, %v755
    %v900 = vpack.c.b16 %v760, %v756
    %v901 = vpack.c.b16 %v761, %v757
    %v902 = vpack.c.b16 %v766, %v762
    %v903 = vpack.c.b16 %v767, %v763
    %v904 = vpack.c.b16 %v768, %v764
    %v905 = vpack.c.b16 %v769, %v765
    %v906 = vpack.c.b16 %v774, %v770
    %v907 = vpack.c.b16 %v775, %v771
    %v908 = vpack.c.b16 %v776, %v772
    %v909 = vpack.c.b16 %v777, %v773
    %v910 = vpack.c.b16 %v782, %v778
    %v911 = vpack.c.b16 %v783, %v779
    %v912 = vpack.c.b16 %v784, %v780
    %v913 = vpack.c.b16 %v785, %v781
    %1042 = vmatprep.subr.bf16.mxu0 %v815
    %1043 = vmatpush1.bf16.msra.mxu0 %v814
    %1044 = vmatprep.subr.bf16.mxu0 %v811
    %1045 = vmatpush1.bf16.msra.mxu0 %v810
    %1046 = vmatprep.subr.bf16.mxu0 %v807
    %1047 = vmatpush1.bf16.msra.mxu0 %v806
    %1048 = vmatprep.subr.bf16.mxu0 %v803
    %1049 = vmatpush1.bf16.msra.mxu0 %v802
    %1050 = vmatprep.subr.bf16.mxu0 %v799
    %1051 = vmatpush1.bf16.msra.mxu0 %v798
    %1052 = vmatprep.subr.bf16.mxu0 %v795
    %1053 = vmatpush1.bf16.msra.mxu0 %v794
    %1054 = vmatprep.subr.bf16.mxu0 %v791
    %1055 = vmatpush1.bf16.msra.mxu0 %v790
    %1056 = vmatprep.subr.bf16.mxu0 %v787
    %1057 = vmatpush1.bf16.msra.mxu0 %v786
    %1058 = vmatprep.subr.bf16.mxu0 %v847
    %1059 = vmatpush2.bf16.msra.mxu0 %v846
    %1060 = vmatprep.subr.bf16.mxu0 %v843
    %1061 = vmatpush2.bf16.msra.mxu0 %v842
    %1062 = vmatprep.subr.bf16.mxu0 %v839
    %1063 = vmatpush2.bf16.msra.mxu0 %v838
    %1064 = vmatprep.subr.bf16.mxu0 %v835
    %1065 = vmatpush2.bf16.msra.mxu0 %v834
    %1066 = vmatprep.subr.bf16.mxu0 %v831
    %1067 = vmatpush2.bf16.msra.mxu0 %v830
    %1068 = vmatprep.subr.bf16.mxu0 %v827
    %1069 = vmatpush2.bf16.msra.mxu0 %v826
    %1070 = vmatprep.subr.bf16.mxu0 %v823
    %1071 = vmatpush2.bf16.msra.mxu0 %v822
    %1072 = vmatprep.subr.bf16.mxu0 %v819
    %1073 = vmatpush2.bf16.msra.mxu0 %v818
    %1074 = vmatprep.mubr.bf16.mxu0 %v249
    %1075 = vmatmul.mubr.bf16.gmra.mxu0 %v248
    %v1076 = vpop.f32.mrf.mxu0
    %v1077 = vadd.f32 %v385, %v1076
    %v1078 = vpop.f32.mrf.mxu0
    %v1079 = vadd.f32 %v389, %v1078
    %v1080 = vpop.f32.mrf.mxu0
    %v1081 = vpop.f32.mrf.mxu0
    %1082 = vdwg.mxu0
    %1083 = vmatprep.subr.bf16.mxu0 %v879
    %1084 = vmatpush1.bf16.msra.mxu0 %v878
    %1085 = vmatprep.subr.bf16.mxu0 %v875
    %1086 = vmatpush1.bf16.msra.mxu0 %v874
    %1087 = vmatprep.subr.bf16.mxu0 %v871
    %1088 = vmatpush1.bf16.msra.mxu0 %v870
    %1089 = vmatprep.subr.bf16.mxu0 %v867
    %1090 = vmatpush1.bf16.msra.mxu0 %v866
    %1091 = vmatprep.subr.bf16.mxu0 %v863
    %1092 = vmatpush1.bf16.msra.mxu0 %v862
    %1093 = vmatprep.subr.bf16.mxu0 %v859
    %1094 = vmatpush1.bf16.msra.mxu0 %v858
    %1095 = vmatprep.subr.bf16.mxu0 %v855
    %1096 = vmatpush1.bf16.msra.mxu0 %v854
    %1097 = vmatprep.subr.bf16.mxu0 %v851
    %1098 = vmatpush1.bf16.msra.mxu0 %v850
    %1099 = vmatprep.subr.bf16.mxu0 %v911
    %1100 = vmatpush2.bf16.msra.mxu0 %v910
    %1101 = vmatprep.subr.bf16.mxu0 %v907
    %1102 = vmatpush2.bf16.msra.mxu0 %v906
    %1103 = vmatprep.subr.bf16.mxu0 %v903
    %1104 = vmatpush2.bf16.msra.mxu0 %v902
    %1105 = vmatprep.subr.bf16.mxu0 %v899
    %1106 = vmatpush2.bf16.msra.mxu0 %v898
    %1107 = vmatprep.subr.bf16.mxu0 %v895
    %1108 = vmatpush2.bf16.msra.mxu0 %v894
    %1109 = vmatprep.subr.bf16.mxu0 %v891
    %1110 = vmatpush2.bf16.msra.mxu0 %v890
    %1111 = vmatprep.subr.bf16.mxu0 %v887
    %1112 = vmatpush2.bf16.msra.mxu0 %v886
    %1113 = vmatprep.subr.bf16.mxu0 %v883
    %1114 = vmatpush2.bf16.msra.mxu0 %v882
    %1115 = vmatprep.mubr.bf16.mxu0 %v251
    %1116 = vmatmul.mubr.bf16.gmra.mxu0 %v250
    %v1117 = vpop.f32.mrf.mxu0
    %v1118 = vadd.f32 %v1077, %v1117
    %v1119 = vpop.f32.mrf.mxu0
    %v1120 = vadd.f32 %v1079, %v1119
    %v1121 = vpop.f32.mrf.mxu0
    %v1122 = vpop.f32.mrf.mxu0
    %1123 = vdwg.mxu0
    %1124 = vmatprep.subr.bf16.mxu0 %v817
    %1125 = vmatpush1.bf16.msra.mxu0 %v816
    %1126 = vmatprep.subr.bf16.mxu0 %v813
    %1127 = vmatpush1.bf16.msra.mxu0 %v812
    %1128 = vmatprep.subr.bf16.mxu0 %v809
    %1129 = vmatpush1.bf16.msra.mxu0 %v808
    %1130 = vmatprep.subr.bf16.mxu0 %v805
    %1131 = vmatpush1.bf16.msra.mxu0 %v804
    %1132 = vmatprep.subr.bf16.mxu0 %v801
    %1133 = vmatpush1.bf16.msra.mxu0 %v800
    %1134 = vmatprep.subr.bf16.mxu0 %v797
    %1135 = vmatpush1.bf16.msra.mxu0 %v796
    %1136 = vmatprep.subr.bf16.mxu0 %v793
    %1137 = vmatpush1.bf16.msra.mxu0 %v792
    %1138 = vmatprep.subr.bf16.mxu0 %v789
    %1139 = vmatpush1.bf16.msra.mxu0 %v788
    %1140 = vmatprep.subr.bf16.mxu0 %v849
    %1141 = vmatpush2.bf16.msra.mxu0 %v848
    %1142 = vmatprep.subr.bf16.mxu0 %v845
    %1143 = vmatpush2.bf16.msra.mxu0 %v844
    %1144 = vmatprep.subr.bf16.mxu0 %v841
    %1145 = vmatpush2.bf16.msra.mxu0 %v840
    %1146 = vmatprep.subr.bf16.mxu0 %v837
    %1147 = vmatpush2.bf16.msra.mxu0 %v836
    %1148 = vmatprep.subr.bf16.mxu0 %v833
    %1149 = vmatpush2.bf16.msra.mxu0 %v832
    %1150 = vmatprep.subr.bf16.mxu0 %v829
    %1151 = vmatpush2.bf16.msra.mxu0 %v828
    %1152 = vmatprep.subr.bf16.mxu0 %v825
    %1153 = vmatpush2.bf16.msra.mxu0 %v824
    %1154 = vmatprep.subr.bf16.mxu0 %v821
    %1155 = vmatpush2.bf16.msra.mxu0 %v820
    %1156 = vmatprep.mubr.bf16.mxu0 %v249
    %1157 = vmatmul.mubr.bf16.gmra.mxu0 %v248
    %v1158 = vpop.f32.mrf.mxu0
    %v1159 = vadd.f32 %v393, %v1158
    %v1160 = vpop.f32.mrf.mxu0
    %v1161 = vadd.f32 %v397, %v1160
    %v1162 = vpop.f32.mrf.mxu0
    %v1163 = vpop.f32.mrf.mxu0
    %1164 = vdwg.mxu0
    %1165 = vmatprep.subr.bf16.mxu0 %v881
    %1166 = vmatpush1.bf16.msra.mxu0 %v880
    %1167 = vmatprep.subr.bf16.mxu0 %v877
    %1168 = vmatpush1.bf16.msra.mxu0 %v876
    %1169 = vmatprep.subr.bf16.mxu0 %v873
    %1170 = vmatpush1.bf16.msra.mxu0 %v872
    %1171 = vmatprep.subr.bf16.mxu0 %v869
    %1172 = vmatpush1.bf16.msra.mxu0 %v868
    %1173 = vmatprep.subr.bf16.mxu0 %v865
    %1174 = vmatpush1.bf16.msra.mxu0 %v864
    %1175 = vmatprep.subr.bf16.mxu0 %v861
    %1176 = vmatpush1.bf16.msra.mxu0 %v860
    %1177 = vmatprep.subr.bf16.mxu0 %v857
    %1178 = vmatpush1.bf16.msra.mxu0 %v856
    %1179 = vmatprep.subr.bf16.mxu0 %v853
    %1180 = vmatpush1.bf16.msra.mxu0 %v852
    %1181 = vmatprep.subr.bf16.mxu0 %v913
    %1182 = vmatpush2.bf16.msra.mxu0 %v912
    %1183 = vmatprep.subr.bf16.mxu0 %v909
    %1184 = vmatpush2.bf16.msra.mxu0 %v908
    %1185 = vmatprep.subr.bf16.mxu0 %v905
    %1186 = vmatpush2.bf16.msra.mxu0 %v904
    %1187 = vmatprep.subr.bf16.mxu0 %v901
    %1188 = vmatpush2.bf16.msra.mxu0 %v900
    %1189 = vmatprep.subr.bf16.mxu0 %v897
    %1190 = vmatpush2.bf16.msra.mxu0 %v896
    %1191 = vmatprep.subr.bf16.mxu0 %v893
    %1192 = vmatpush2.bf16.msra.mxu0 %v892
    %1193 = vmatprep.subr.bf16.mxu0 %v889
    %1194 = vmatpush2.bf16.msra.mxu0 %v888
    %1195 = vmatprep.subr.bf16.mxu0 %v885
    %1196 = vmatpush2.bf16.msra.mxu0 %v884
    %1197 = vmatprep.mubr.bf16.mxu0 %v251
    %1198 = vmatmul.mubr.bf16.gmra.mxu0 %v250
    %v1199 = vpop.f32.mrf.mxu0
    %v1200 = vadd.f32 %v1159, %v1199
    %v1201 = vpop.f32.mrf.mxu0
    %v1202 = vadd.f32 %v1161, %v1201
    %v1203 = vpop.f32.mrf.mxu0
    %v1204 = vpop.f32.mrf.mxu0
    %1205 = vdwg.mxu0
    %v1206 = vpack.c.bf16 %v1118, %v1118
    %v1207 = vpack.c.bf16 %v1120, %v1120
    %v1208 = vpack.c.bf16 %v1200, %v1200
    %v1209 = vpack.c.bf16 %v1202, %v1202
    %v1210 = vmax.bf16 %v1206, 0
    %v1211 = vmax.bf16 %v1207, 0
    %v1212 = vmax.bf16 %v1208, 0
    %v1213 = vmax.bf16 %v1209, 0
    %v1214 = vld [vmem:[#allocation10] sm:$0xf]
    %v1215 = vld [vmem:[#allocation10 + $0x4] sm:$0xf]
    %v1216 = vld [vmem:[#allocation10 + $0x8] sm:$0xf]
    %v1217 = vld [vmem:[#allocation10 + $0xc] sm:$0xf]
    %v1218 = vld [vmem:[#allocation10 + $0x10] sm:$0xf]
    %v1219 = vld [vmem:[#allocation10 + $0x14] sm:$0xf]
    %v1220 = vld [vmem:[#allocation10 + $0x18] sm:$0xf]
    %v1221 = vld [vmem:[#allocation10 + $0x1c] sm:$0xf]
    %v1222 = vld [vmem:[#allocation10 + $0x20] sm:$0xf]
    %v1223 = vld [vmem:[#allocation10 + $0x24] sm:$0xf]
    %v1224 = vld [vmem:[#allocation10 + $0x28] sm:$0xf]
    %v1225 = vld [vmem:[#allocation10 + $0x2c] sm:$0xf]
    %v1226 = vld [vmem:[#allocation10 + $0x30] sm:$0xf]
    %v1227 = vld [vmem:[#allocation10 + $0x34] sm:$0xf]
    %v1228 = vld [vmem:[#allocation10 + $0x38] sm:$0xf]
    %v1229 = vld [vmem:[#allocation10 + $0x3c] sm:$0xf]
    %v1230 = vld [vmem:[#allocation10 + $0x40] sm:$0xf]
    %v1231 = vld [vmem:[#allocation10 + $0x44] sm:$0xf]
    %v1232 = vld [vmem:[#allocation10 + $0x48] sm:$0xf]
    %v1233 = vld [vmem:[#allocation10 + $0x4c] sm:$0xf]
    %v1234 = vld [vmem:[#allocation10 + $0x50] sm:$0xf]
    %v1235 = vld [vmem:[#allocation10 + $0x54] sm:$0xf]
    %v1236 = vld [vmem:[#allocation10 + $0x58] sm:$0xf]
    %v1237 = vld [vmem:[#allocation10 + $0x5c] sm:$0xf]
    %v1238 = vld [vmem:[#allocation10 + $0x60] sm:$0xf]
    %v1239 = vld [vmem:[#allocation10 + $0x64] sm:$0xf]
    %v1240 = vld [vmem:[#allocation10 + $0x68] sm:$0xf]
    %v1241 = vld [vmem:[#allocation10 + $0x6c] sm:$0xf]
    %v1242 = vld [vmem:[#allocation10 + $0x70] sm:$0xf]
    %v1243 = vld [vmem:[#allocation10 + $0x74] sm:$0xf]
    %v1244 = vld [vmem:[#allocation10 + $0x78] sm:$0xf]
    %v1245 = vld [vmem:[#allocation10 + $0x7c] sm:$0xf]
    %v1246 = vld [vmem:[#allocation10 + $0x80] sm:$0xf]
    %v1247 = vld [vmem:[#allocation10 + $0x84] sm:$0xf]
    %v1248 = vld [vmem:[#allocation10 + $0x88] sm:$0xf]
    %v1249 = vld [vmem:[#allocation10 + $0x8c] sm:$0xf]
    %v1250 = vld [vmem:[#allocation10 + $0x90] sm:$0xf]
    %v1251 = vld [vmem:[#allocation10 + $0x94] sm:$0xf]
    %v1252 = vld [vmem:[#allocation10 + $0x98] sm:$0xf]
    %v1253 = vld [vmem:[#allocation10 + $0x9c] sm:$0xf]
    %v1254 = vld [vmem:[#allocation10 + $0xa0] sm:$0xf]
    %v1255 = vld [vmem:[#allocation10 + $0xa4] sm:$0xf]
    %v1256 = vld [vmem:[#allocation10 + $0xa8] sm:$0xf]
    %v1257 = vld [vmem:[#allocation10 + $0xac] sm:$0xf]
    %v1258 = vld [vmem:[#allocation10 + $0xb0] sm:$0xf]
    %v1259 = vld [vmem:[#allocation10 + $0xb4] sm:$0xf]
    %v1260 = vld [vmem:[#allocation10 + $0xb8] sm:$0xf]
    %v1261 = vld [vmem:[#allocation10 + $0xbc] sm:$0xf]
    %v1262 = vld [vmem:[#allocation10 + $0xc0] sm:$0xf]
    %v1263 = vld [vmem:[#allocation10 + $0xc4] sm:$0xf]
    %v1264 = vld [vmem:[#allocation10 + $0xc8] sm:$0xf]
    %v1265 = vld [vmem:[#allocation10 + $0xcc] sm:$0xf]
    %v1266 = vld [vmem:[#allocation10 + $0xd0] sm:$0xf]
    %v1267 = vld [vmem:[#allocation10 + $0xd4] sm:$0xf]
    %v1268 = vld [vmem:[#allocation10 + $0xd8] sm:$0xf]
    %v1269 = vld [vmem:[#allocation10 + $0xdc] sm:$0xf]
    %v1270 = vld [vmem:[#allocation10 + $0xe0] sm:$0xf]
    %v1271 = vld [vmem:[#allocation10 + $0xe4] sm:$0xf]
    %v1272 = vld [vmem:[#allocation10 + $0xe8] sm:$0xf]
    %v1273 = vld [vmem:[#allocation10 + $0xec] sm:$0xf]
    %v1274 = vld [vmem:[#allocation10 + $0xf0] sm:$0xf]
    %v1275 = vld [vmem:[#allocation10 + $0xf4] sm:$0xf]
    %v1276 = vld [vmem:[#allocation10 + $0xf8] sm:$0xf]
    %v1277 = vld [vmem:[#allocation10 + $0xfc] sm:$0xf]
    %v1278 = vld [vmem:[%s6] sm:$0x1]
    %v1280 = vlaneseq
    %v1281 = vshrl.u32 %v1280, 7
    %v1282 = vsub.s32 0, %v1281
    %v1283 = vrot.slane %v1278, %v1282
    %v1349 = vunpack.c.l.b16 %v1214
    %v1350 = vunpack.c.l.b16 %v1215
    %v1351 = vunpack.c.l.b16 %v1216
    %v1352 = vunpack.c.l.b16 %v1217
    %v1353 = vunpack.c.l.b16 %v1218
    %v1354 = vunpack.c.l.b16 %v1219
    %v1355 = vunpack.c.l.b16 %v1220
    %v1356 = vunpack.c.l.b16 %v1221
    %v1357 = vunpack.c.l.b16 %v1222
    %v1358 = vunpack.c.l.b16 %v1223
    %v1359 = vunpack.c.l.b16 %v1224
    %v1360 = vunpack.c.l.b16 %v1225
    %v1361 = vunpack.c.l.b16 %v1226
    %v1362 = vunpack.c.l.b16 %v1227
    %v1363 = vunpack.c.l.b16 %v1228
    %v1364 = vunpack.c.l.b16 %v1229
    %v1365 = vunpack.c.l.b16 %v1230
    %v1366 = vunpack.c.l.b16 %v1231
    %v1367 = vunpack.c.l.b16 %v1232
    %v1368 = vunpack.c.l.b16 %v1233
    %v1369 = vunpack.c.l.b16 %v1234
    %v1370 = vunpack.c.l.b16 %v1235
    %v1371 = vunpack.c.l.b16 %v1236
    %v1372 = vunpack.c.l.b16 %v1237
    %v1373 = vunpack.c.l.b16 %v1238
    %v1374 = vunpack.c.l.b16 %v1239
    %v1375 = vunpack.c.l.b16 %v1240
    %v1376 = vunpack.c.l.b16 %v1241
    %v1377 = vunpack.c.l.b16 %v1242
    %v1378 = vunpack.c.l.b16 %v1243
    %v1379 = vunpack.c.l.b16 %v1244
    %v1380 = vunpack.c.l.b16 %v1245
    %v1381 = vunpack.c.l.b16 %v1246
    %v1382 = vunpack.c.l.b16 %v1247
    %v1383 = vunpack.c.l.b16 %v1248
    %v1384 = vunpack.c.l.b16 %v1249
    %v1385 = vunpack.c.l.b16 %v1250
    %v1386 = vunpack.c.l.b16 %v1251
    %v1387 = vunpack.c.l.b16 %v1252
    %v1388 = vunpack.c.l.b16 %v1253
    %v1389 = vunpack.c.l.b16 %v1254
    %v1390 = vunpack.c.l.b16 %v1255
    %v1391 = vunpack.c.l.b16 %v1256
    %v1392 = vunpack.c.l.b16 %v1257
    %v1393 = vunpack.c.l.b16 %v1258
    %v1394 = vunpack.c.l.b16 %v1259
    %v1395 = vunpack.c.l.b16 %v1260
    %v1396 = vunpack.c.l.b16 %v1261
    %v1397 = vunpack.c.l.b16 %v1262
    %v1398 = vunpack.c.l.b16 %v1263
    %v1399 = vunpack.c.l.b16 %v1264
    %v1400 = vunpack.c.l.b16 %v1265
    %v1401 = vunpack.c.l.b16 %v1266
    %v1402 = vunpack.c.l.b16 %v1267
    %v1403 = vunpack.c.l.b16 %v1268
    %v1404 = vunpack.c.l.b16 %v1269
    %v1405 = vunpack.c.l.b16 %v1270
    %v1406 = vunpack.c.l.b16 %v1271
    %v1407 = vunpack.c.l.b16 %v1272
    %v1408 = vunpack.c.l.b16 %v1273
    %v1409 = vunpack.c.l.b16 %v1274
    %v1410 = vunpack.c.l.b16 %v1275
    %v1411 = vunpack.c.l.b16 %v1276
    %v1412 = vunpack.c.l.b16 %v1277
    %v1413 = vpack.c.b16 %v1350, %v1349
    %v1414 = vpack.c.b16 %v1352, %v1351
    %v1415 = vpack.c.b16 %v1354, %v1353
    %v1416 = vpack.c.b16 %v1356, %v1355
    %v1417 = vpack.c.b16 %v1358, %v1357
    %v1418 = vpack.c.b16 %v1360, %v1359
    %v1419 = vpack.c.b16 %v1362, %v1361
    %v1420 = vpack.c.b16 %v1364, %v1363
    %v1421 = vpack.c.b16 %v1366, %v1365
    %v1422 = vpack.c.b16 %v1368, %v1367
    %v1423 = vpack.c.b16 %v1370, %v1369
    %v1424 = vpack.c.b16 %v1372, %v1371
    %v1425 = vpack.c.b16 %v1374, %v1373
    %v1426 = vpack.c.b16 %v1376, %v1375
    %v1427 = vpack.c.b16 %v1378, %v1377
    %v1428 = vpack.c.b16 %v1380, %v1379
    %v1429 = vpack.c.b16 %v1382, %v1381
    %v1430 = vpack.c.b16 %v1384, %v1383
    %v1431 = vpack.c.b16 %v1386, %v1385
    %v1432 = vpack.c.b16 %v1388, %v1387
    %v1433 = vpack.c.b16 %v1390, %v1389
    %v1434 = vpack.c.b16 %v1392, %v1391
    %v1435 = vpack.c.b16 %v1394, %v1393
    %v1436 = vpack.c.b16 %v1396, %v1395
    %v1437 = vpack.c.b16 %v1398, %v1397
    %v1438 = vpack.c.b16 %v1400, %v1399
    %v1439 = vpack.c.b16 %v1402, %v1401
    %v1440 = vpack.c.b16 %v1404, %v1403
    %v1441 = vpack.c.b16 %v1406, %v1405
    %v1442 = vpack.c.b16 %v1408, %v1407
    %v1443 = vpack.c.b16 %v1410, %v1409
    %v1444 = vpack.c.b16 %v1412, %v1411
    %1477 = vmatprep.subr.bf16.mxu0 0
    %1478 = vmatpush1.bf16.msra.mxu0 %v1420
    %1479 = vmatprep.subr.bf16.mxu0 0
    %1480 = vmatpush1.bf16.msra.mxu0 %v1419
    %1481 = vmatprep.subr.bf16.mxu0 0
    %1482 = vmatpush1.bf16.msra.mxu0 %v1418
    %1483 = vmatprep.subr.bf16.mxu0 0
    %1484 = vmatpush1.bf16.msra.mxu0 %v1417
    %1485 = vmatprep.subr.bf16.mxu0 0
    %1486 = vmatpush1.bf16.msra.mxu0 %v1416
    %1487 = vmatprep.subr.bf16.mxu0 0
    %1488 = vmatpush1.bf16.msra.mxu0 %v1415
    %1489 = vmatprep.subr.bf16.mxu0 0
    %1490 = vmatpush1.bf16.msra.mxu0 %v1414
    %1491 = vmatprep.subr.bf16.mxu0 0
    %1492 = vmatpush1.bf16.msra.mxu0 %v1413
    %1493 = vmatprep.subr.bf16.mxu0 0
    %1494 = vmatpush2.bf16.msra.mxu0 %v1428
    %1495 = vmatprep.subr.bf16.mxu0 0
    %1496 = vmatpush2.bf16.msra.mxu0 %v1427
    %1497 = vmatprep.subr.bf16.mxu0 0
    %1498 = vmatpush2.bf16.msra.mxu0 %v1426
    %1499 = vmatprep.subr.bf16.mxu0 0
    %1500 = vmatpush2.bf16.msra.mxu0 %v1425
    %1501 = vmatprep.subr.bf16.mxu0 0
    %1502 = vmatpush2.bf16.msra.mxu0 %v1424
    %1503 = vmatprep.subr.bf16.mxu0 0
    %1504 = vmatpush2.bf16.msra.mxu0 %v1423
    %1505 = vmatprep.subr.bf16.mxu0 0
    %1506 = vmatpush2.bf16.msra.mxu0 %v1422
    %1507 = vmatprep.subr.bf16.mxu0 0
    %1508 = vmatpush2.bf16.msra.mxu0 %v1421
    %1509 = vmatprep.mubr.bf16.mxu0 %v1211
    %1510 = vmatmul.mubr.bf16.gmra.mxu0 %v1210
    %v1511 = vpop.f32.mrf.mxu0
    %v1512 = vadd.f32 %v1283, %v1511
    %v1513 = vpop.f32.mrf.mxu0
    %v1514 = vpop.f32.mrf.mxu0
    %v1515 = vpop.f32.mrf.mxu0
    %1516 = vdwg.mxu0
    %1517 = vmatprep.subr.bf16.mxu0 0
    %1518 = vmatpush1.bf16.msra.mxu0 %v1436
    %1519 = vmatprep.subr.bf16.mxu0 0
    %1520 = vmatpush1.bf16.msra.mxu0 %v1435
    %1521 = vmatprep.subr.bf16.mxu0 0
    %1522 = vmatpush1.bf16.msra.mxu0 %v1434
    %1523 = vmatprep.subr.bf16.mxu0 0
    %1524 = vmatpush1.bf16.msra.mxu0 %v1433
    %1525 = vmatprep.subr.bf16.mxu0 0
    %1526 = vmatpush1.bf16.msra.mxu0 %v1432
    %1527 = vmatprep.subr.bf16.mxu0 0
    %1528 = vmatpush1.bf16.msra.mxu0 %v1431
    %1529 = vmatprep.subr.bf16.mxu0 0
    %1530 = vmatpush1.bf16.msra.mxu0 %v1430
    %1531 = vmatprep.subr.bf16.mxu0 0
    %1532 = vmatpush1.bf16.msra.mxu0 %v1429
    %1533 = vmatprep.subr.bf16.mxu0 0
    %1534 = vmatpush2.bf16.msra.mxu0 %v1444
    %1535 = vmatprep.subr.bf16.mxu0 0
    %1536 = vmatpush2.bf16.msra.mxu0 %v1443
    %1537 = vmatprep.subr.bf16.mxu0 0
    %1538 = vmatpush2.bf16.msra.mxu0 %v1442
    %1539 = vmatprep.subr.bf16.mxu0 0
    %1540 = vmatpush2.bf16.msra.mxu0 %v1441
    %1541 = vmatprep.subr.bf16.mxu0 0
    %1542 = vmatpush2.bf16.msra.mxu0 %v1440
    %1543 = vmatprep.subr.bf16.mxu0 0
    %1544 = vmatpush2.bf16.msra.mxu0 %v1439
    %1545 = vmatprep.subr.bf16.mxu0 0
    %1546 = vmatpush2.bf16.msra.mxu0 %v1438
    %1547 = vmatprep.subr.bf16.mxu0 0
    %1548 = vmatpush2.bf16.msra.mxu0 %v1437
    %1549 = vmatprep.mubr.bf16.mxu0 %v1213
    %1550 = vmatmul.mubr.bf16.gmra.mxu0 %v1212
    %v1551 = vpop.f32.mrf.mxu0
    %v1552 = vadd.f32 %v1512, %v1551
    %v1553 = vpop.f32.mrf.mxu0
    %v1554 = vpop.f32.mrf.mxu0
    %v1555 = vpop.f32.mrf.mxu0
    %1556 = vdwg.mxu0
    %v1557 = vpack.c.bf16 %v1552, %v1552
    %v1558 = vmax.bf16 %v1557, 0
    %v1559 = vld [vmem:[#allocation11] sm:$0xf]
    %v1560 = vld [vmem:[#allocation11 + $0x4] sm:$0xf]
    %v1561 = vld [vmem:[#allocation11 + $0x8] sm:$0xf]
    %v1562 = vld [vmem:[#allocation11 + $0xc] sm:$0xf]
    %v1563 = vld [vmem:[#allocation11 + $0x10] sm:$0xf]
    %v1564 = vld [vmem:[#allocation11 + $0x14] sm:$0xf]
    %v1565 = vld [vmem:[#allocation11 + $0x18] sm:$0xf]
    %v1566 = vld [vmem:[#allocation11 + $0x1c] sm:$0xf]
    %v1567 = vld [vmem:[#allocation11 + $0x20] sm:$0xf]
    %v1568 = vld [vmem:[#allocation11 + $0x24] sm:$0xf]
    %v1569 = vld [vmem:[#allocation11 + $0x28] sm:$0xf]
    %v1570 = vld [vmem:[#allocation11 + $0x2c] sm:$0xf]
    %v1571 = vld [vmem:[#allocation11 + $0x30] sm:$0xf]
    %v1572 = vld [vmem:[#allocation11 + $0x34] sm:$0xf]
    %v1573 = vld [vmem:[#allocation11 + $0x38] sm:$0xf]
    %v1574 = vld [vmem:[#allocation11 + $0x3c] sm:$0xf]
    %v1575 = vld [vmem:[%s8] sm:$0x1]
    %v1577 = vlaneseq
    %v1578 = vshrl.u32 %v1577, 7
    %v1579 = vsub.s32 0, %v1578
    %v1580 = vrot.slane %v1575, %v1579
    %v1598 = vunpack.c.l.b16 %v1559
    %v1599 = vunpack.c.l.b16 %v1560
    %v1600 = vunpack.c.l.b16 %v1561
    %v1601 = vunpack.c.l.b16 %v1562
    %v1602 = vunpack.c.l.b16 %v1563
    %v1603 = vunpack.c.l.b16 %v1564
    %v1604 = vunpack.c.l.b16 %v1565
    %v1605 = vunpack.c.l.b16 %v1566
    %v1606 = vunpack.c.l.b16 %v1567
    %v1607 = vunpack.c.l.b16 %v1568
    %v1608 = vunpack.c.l.b16 %v1569
    %v1609 = vunpack.c.l.b16 %v1570
    %v1610 = vunpack.c.l.b16 %v1571
    %v1611 = vunpack.c.l.b16 %v1572
    %v1612 = vunpack.c.l.b16 %v1573
    %v1613 = vunpack.c.l.b16 %v1574
    %v1614 = vpack.c.b16 %v1599, %v1598
    %v1615 = vpack.c.b16 %v1601, %v1600
    %v1616 = vpack.c.b16 %v1603, %v1602
    %v1617 = vpack.c.b16 %v1605, %v1604
    %v1618 = vpack.c.b16 %v1607, %v1606
    %v1619 = vpack.c.b16 %v1609, %v1608
    %v1620 = vpack.c.b16 %v1611, %v1610
    %v1621 = vpack.c.b16 %v1613, %v1612
    %1630 = vmatprep.subr.bf16.mxu0 0
    %1631 = vmatpush1.bf16.msra.mxu0 %v1621
    %1632 = vmatprep.subr.bf16.mxu0 0
    %1633 = vmatpush1.bf16.msra.mxu0 %v1620
    %1634 = vmatprep.subr.bf16.mxu0 0
    %1635 = vmatpush1.bf16.msra.mxu0 %v1619
    %1636 = vmatprep.subr.bf16.mxu0 0
    %1637 = vmatpush1.bf16.msra.mxu0 %v1618
    %1638 = vmatprep.subr.bf16.mxu0 0
    %1639 = vmatpush1.bf16.msra.mxu0 %v1617
    %1640 = vmatprep.subr.bf16.mxu0 0
    %1641 = vmatpush1.bf16.msra.mxu0 %v1616
    %1642 = vmatprep.subr.bf16.mxu0 0
    %1643 = vmatpush1.bf16.msra.mxu0 %v1615
    %1644 = vmatprep.subr.bf16.mxu0 0
    %1645 = vmatpush1.bf16.msra.mxu0 %v1614
    %1646 = vmatprep.subr.bf16.mxu0 0
    %1647 = vmatpush2.bf16.msra.mxu0 0
    %1648 = vmatprep.subr.bf16.mxu0 0
    %1649 = vmatpush2.bf16.msra.mxu0 0
    %1650 = vmatprep.subr.bf16.mxu0 0
    %1651 = vmatpush2.bf16.msra.mxu0 0
    %1652 = vmatprep.subr.bf16.mxu0 0
    %1653 = vmatpush2.bf16.msra.mxu0 0
    %1654 = vmatprep.subr.bf16.mxu0 0
    %1655 = vmatpush2.bf16.msra.mxu0 0
    %1656 = vmatprep.subr.bf16.mxu0 0
    %1657 = vmatpush2.bf16.msra.mxu0 0
    %1658 = vmatprep.subr.bf16.mxu0 0
    %1659 = vmatpush2.bf16.msra.mxu0 0
    %1660 = vmatprep.subr.bf16.mxu0 0
    %1661 = vmatpush2.bf16.msra.mxu0 0
    %1662 = vmatprep.mubr.bf16.mxu0 0
    %1663 = vmatmul.mubr.bf16.gmra.mxu0 %v1558
    %v1664 = vpop.f32.mrf.mxu0
    %v1665 = vadd.f32 %v1580, %v1664
    %v1666 = vpop.f32.mrf.mxu0
    %v1667 = vpop.f32.mrf.mxu0
    %v1668 = vpop.f32.mrf.mxu0
    %1669 = vdwg.mxu0
    %v1670 = vtanh.pop %v1665
    %v1671 = vpack.c.bf16 %v1670, %v1670
    %1672 = vst [vmem:[#allocation13] sm:$0xf] %v1671
    // Predicated region
    $region62: #{tpu_custom_call.1} parent=1 // pred_check
      _
    $region63: #{tpu_custom_call.1} parent=1 // pred_check_branch
      %1674 = sbr.rel (0) target = $region65
    $region64: #{tpu_custom_call.1} parent=1 // pred_region
      %s1676 = ssub.s32 64, 64
      %1677 = vsyncadd [#allocation4], %s1676
      %s1679 = sshll.u32 [#allocation13], 4
      %s1680 = int_to_ptr.vmem [resolvable:$true] %s1679
      %1682 = dma.vmem_to_hbm [thread:$0]  %s1680, 64, %s9, [#allocation4]
    $region65: #{tpu_custom_call.1} parent=1 // pred_fallthru
      _
    // Predicated region
    $region66: #{tpu_custom_call.1} parent=1 // pred_check
      _
    $region67: #{tpu_custom_call.1} parent=1 // pred_check_branch
      %1684 = sbr.rel (0) target = $region69
    $region68: #{tpu_custom_call.1} parent=1 // pred_region
      %1685 = dma.done [#allocation4], 64
    $region69: #{tpu_custom_call.1} parent=1 // pred_fallthru
      _
    %1686 = vsyncpa [#allocation3], 1
    %1687 = vsyncpa [#allocation6], 1
    %1688 = vsyncpa [#allocation9], 1
    %1689 = vsyncpa [#allocation12], 1
    %1690 = vsyncpa [#allocation4], 1

</llo_original>
